<compile_context>
chip_gen: v5e
topology: v5e:2x2
jax: 0.10.0
libtpu: 0.0.40
codegen_flags: <defaults>
</compile_context>

<pallas_src>
import functools

import numpy as np
import jax
import jax.numpy as jnp
from jax.experimental import pallas as pl
from jax.experimental.pallas import tpu as pltpu


# ----------------------------------------------------------------------------
# shape / gather-matrix helpers (host-side, static)
# ----------------------------------------------------------------------------
def conv2d_output_shape(h, w, kernel_size=1, stride=1, padding=0, dilation=1):
    kh = kw = kernel_size
    sh = sw = stride
    ph = pw = padding
    d = dilation
    h = (h + 2 * ph - d * (kh - 1) - 1) // sh + 1
    w = (w + 2 * pw - d * (kw - 1) - 1) // sw + 1
    return h, w


def _build_conv_gather(h_in, w_in, k, stride, pad, h_out, w_out):
    """One-hot spatial gather matrices, one per (kh, kw) conv tap.

    G[t, i*w_in + j, ho*w_out + wo] = 1 iff tap (kh, kw) at output (ho, wo)
    reads input pixel (i, j).  Taps that read the zero padding get an all-zero
    column, reproducing zero padding exactly.  Shape [k*k, h_in*w_in, h_out*w_out].
    """
    G = np.zeros((k * k, h_in * w_in, h_out * w_out), np.float32)
    for kh in range(k):
        for kw in range(k):
            t = kh * k + kw
            for ho in range(h_out):
                i = ho * stride + kh - pad
                if not (0 <= i < h_in):
                    continue
                for wo in range(w_out):
                    j = wo * stride + kw - pad
                    if not (0 <= j < w_in):
                        continue
                    G[t, i * w_in + j, ho * w_out + wo] = 1.0
    return G


def _build_pool_gather(h_in, w_in, m, h_out, w_out):
    """One-hot gather per max-pool window offset. [m*m, h_in*w_in, h_out*w_out]."""
    G = np.zeros((m * m, h_in * w_in, h_out * w_out), np.float32)
    for qh in range(m):
        for qw in range(m):
            q = qh * m + qw
            for ho in range(h_out):
                for wo in range(w_out):
                    i, j = ho * m + qh, wo * m + qw
                    G[q, i * w_in + j, ho * w_out + wo] = 1.0
    return G


# ----------------------------------------------------------------------------
# Pallas kernel 1: fused conv stack (all layers), one image per grid step.
# ----------------------------------------------------------------------------
def _conv_stack_kernel(*refs, layers):
    """refs = (x_ref, [G_l, W_l, b_l, (Gp_l)] per layer ..., out_ref)

    x_ref   : [1, C0, H0*W0]              channels-major, flattened spatial
    G_l     : [k*k, HW_in_l, HW_out_l]    one-hot patch gather (pad folded in)
    W_l     : [k*k, C_out_l, C_in_l]      conv weight, one [C_out, C_in] per tap
    b_l     : [C_out_l, 1]
    Gp_l    : [m*m, HW_conv_l, HW_pool_l] (only when max-pooling this layer)
    out_ref : [1, C_last, HW_last]
    `layers` is a static tuple of (num_taps, num_pool_taps).
    """
    out_ref = refs[-1]
    a = refs[0][0]                       # [C_in, HW_in] activation (VMEM value)
    idx = 1
    for taps, pool_taps in layers:       # static Python unroll over layers
        g_ref, w_ref, b_ref = refs[idx], refs[idx + 1], refs[idx + 2]
        idx += 3
        acc = None
        for t in range(taps):            # static unroll over k*k taps (MXU)
            xg = jnp.dot(a, g_ref[t], preferred_element_type=jnp.float32)
            contrib = jnp.dot(w_ref[t], xg, preferred_element_type=jnp.float32)
            acc = contrib if acc is None else acc + contrib
        a = jnp.maximum(acc + b_ref[...], 0.0)          # bias + ReLU (VPU)
        if pool_taps:                    # fused MaxPool2d epilogue
            gp_ref = refs[idx]
            idx += 1
            pooled = None
            for q in range(pool_taps):
                sel = jnp.dot(a, gp_ref[q], preferred_element_type=jnp.float32)
                pooled = sel if pooled is None else jnp.maximum(pooled, sel)
            a = pooled
    out_ref[0] = a.astype(out_ref.dtype)


def conv_stack_forward(x_flat, layer_params, layer_meta, out_channels, out_hw):
    """x_flat: [B, C0, H0*W0] -> [B, C_last, HW_last] in one fused pallas_call."""
    B, C0, HW0 = x_flat.shape
    inputs = [x_flat]
    in_specs = [pl.BlockSpec((1, C0, HW0), lambda b: (b, 0, 0))]
    flops = 0
    for (G, W, bias, Gp) in layer_params:
        inputs.extend([G, W, bias])
        in_specs.extend([
            pl.BlockSpec(G.shape, lambda b: (0, 0, 0)),
            pl.BlockSpec(W.shape, lambda b: (0, 0, 0)),
            pl.BlockSpec(bias.shape, lambda b: (0, 0)),
        ])
        taps, hw_in, hw_out = G.shape
        c_out, c_in = W.shape[1], W.shape[2]
        flops += 2 * taps * (c_in * hw_in * hw_out + c_out * c_in * hw_out)
        if Gp is not None:
            inputs.append(Gp)
            in_specs.append(pl.BlockSpec(Gp.shape, lambda b: (0, 0, 0)))
            pq, hw_c, hw_p = Gp.shape
            flops += 2 * pq * c_out * hw_c * hw_p
    flops *= B
    bytes_accessed = sum(int(np.prod(a.shape)) * 4 for a in inputs)
    bytes_accessed += B * out_channels * out_hw * 4

    kernel = functools.partial(_conv_stack_kernel, layers=tuple(layer_meta))
    return pl.pallas_call(
        kernel,
        out_shape=jax.ShapeDtypeStruct((B, out_channels, out_hw), x_flat.dtype),
        grid=(B,),
        in_specs=in_specs,
        out_specs=pl.BlockSpec((1, out_channels, out_hw), lambda b: (b, 0, 0)),
        compiler_params=pltpu.CompilerParams(
            dimension_semantics=("parallel",),
            vmem_limit_bytes=32 * 1024 * 1024),
        cost_estimate=pl.CostEstimate(flops=flops, transcendentals=0,
                                      bytes_accessed=bytes_accessed),
    )(*inputs)


# ----------------------------------------------------------------------------
# Pallas kernel 2: fused MLP head (all Linear (+ReLU) layers), batch-tiled.
# ----------------------------------------------------------------------------
def _mlp_kernel(*refs, relu_flags):
    """refs = (x_ref, W0, b0, W1, b1, ..., out_ref).  y = ((x@W0+b0)...)."""
    out_ref = refs[-1]
    h = refs[0][...]
    for i, relu in enumerate(relu_flags):
        w = refs[1 + 2 * i][...]
        b = refs[2 + 2 * i][...]
        h = jnp.dot(h, w, preferred_element_type=jnp.float32) + b
        if relu:
            h = jnp.maximum(h, 0.0)
    out_ref[...] = h.astype(out_ref.dtype)


def mlp_forward(x, params):
    """x: [B, K0]; params: list of (W [K,N], b [1,N], relu). One fused kernel."""
    B, K0 = x.shape
    n_out = params[-1][0].shape[1]
    tile_m = 256 if B >= 256 else B          # tile rows for pipelining at scale
    grid = (pl.cdiv(B, tile_m),)
    inputs = [x]
    in_specs = [pl.BlockSpec((tile_m, K0), lambda i: (i, 0))]
    relu_flags = []
    flops = 0
    for (W, bias, relu) in params:
        inputs.extend([W, bias])
        in_specs.extend([
            pl.BlockSpec(W.shape, lambda i: (0, 0)),
            pl.BlockSpec(bias.shape, lambda i: (0, 0)),
        ])
        relu_flags.append(relu)
        flops += 2 * B * W.shape[0] * W.shape[1]
    bytes_accessed = sum(int(np.prod(a.shape)) * 4 for a in inputs) + B * n_out * 4

    kernel = functools.partial(_mlp_kernel, relu_flags=tuple(relu_flags))
    return pl.pallas_call(
        kernel,
        out_shape=jax.ShapeDtypeStruct((B, n_out), x.dtype),
        grid=grid,
        in_specs=in_specs,
        out_specs=pl.BlockSpec((tile_m, n_out), lambda i: (i, 0)),
        compiler_params=pltpu.CompilerParams(
            dimension_semantics=("parallel",),
            vmem_limit_bytes=32 * 1024 * 1024),
        cost_estimate=pl.CostEstimate(flops=flops, transcendentals=0,
                                      bytes_accessed=bytes_accessed),
    )(*inputs)


# ----------------------------------------------------------------------------
# Conv2dHeadModel: conv stack kernel + MLP head kernel.
# ----------------------------------------------------------------------------
class Conv2dHeadModelPallas:
    def __init__(self, key, image_shape, channels, kernel_sizes, strides,
                 hidden_sizes, output_size=None, paddings=None,
                 use_maxpool=False):
        c, h, w = image_shape
        if paddings is None:
            paddings = [0] * len(channels)
        if isinstance(hidden_sizes, int):
            hidden_sizes = [hidden_sizes]
        elif hidden_sizes is None:
            hidden_sizes = []
        else:
            hidden_sizes = list(hidden_sizes)
        assert len(channels) == len(kernel_sizes) == len(strides) == len(paddings)

        in_channels = [c] + list(channels[:-1])
        if use_maxpool:
            maxp_strides = list(strides)
            conv_strides = [1] * len(strides)
        else:
            maxp_strides = [1] * len(strides)
            conv_strides = list(strides)

        # Torch-style uniform(-1/sqrt(fan_in), 1/sqrt(fan_in)) init.
        def uinit(k_, shape, fan_in):
            bound = 1.0 / float(np.sqrt(fan_in))
            return jax.random.uniform(k_, shape, jnp.float32, -bound, bound)

        self.in_shape = (c, h, w)
        self.conv_layer_params = []   # (G, W_taps, bias[:, None], Gp_or_None)
        self.conv_layer_meta = []     # (num_taps, num_pool_taps)
        hh, ww = h, w
        for ic, oc, k, s, p, mp in zip(in_channels, channels, kernel_sizes,
                                       conv_strides, paddings, maxp_strides):
            key, kw_, kb_ = jax.random.split(key, 3)
            fan_in = ic * k * k
            W = uinit(kw_, (oc, ic, k, k), fan_in)       # torch layout [O,C,kh,kw]
            bias = uinit(kb_, (oc,), fan_in)
            ho, wo = conv2d_output_shape(hh, ww, k, s, p)
            G = jnp.asarray(_build_conv_gather(hh, ww, k, s, p, ho, wo))
            # [O,C,kh,kw] -> [kh*kw, O, C]  (tap-major, matches G tap ordering)
            W_taps = jnp.transpose(W, (2, 3, 0, 1)).reshape(k * k, oc, ic)
            if mp > 1:
                hp, wp = conv2d_output_shape(ho, wo, mp, mp, 0)
                Gp = jnp.asarray(_build_pool_gather(ho, wo, mp, hp, wp))
                pool_taps = mp * mp
            else:
                hp, wp = ho, wo
                Gp, pool_taps = None, 0
            self.conv_layer_params.append((G, W_taps, bias.reshape(oc, 1), Gp))
            self.conv_layer_meta.append((k * k, pool_taps))
            hh, ww = hp, wp

        self.conv_out_channels = channels[-1]
        self.conv_out_hw = hh * ww
        self.conv_out_size = self.conv_out_channels * self.conv_out_hw

        # MLP head: weights stored [in, out] (y = x @ W + b).
        self.mlp_params = []
        sizes_in = [self.conv_out_size] + hidden_sizes[:-1]
        for n_in, n_out in zip(sizes_in, hidden_sizes):
            key, kw_, kb_ = jax.random.split(key, 3)
            self.mlp_params.append(
                (uinit(kw_, (n_in, n_out), n_in),
                 uinit(kb_, (1, n_out), n_in), True))
        if output_size is not None:
            last = hidden_sizes[-1] if hidden_sizes else self.conv_out_size
            key, kw_, kb_ = jax.random.split(key, 3)
            self.mlp_params.append(
                (uinit(kw_, (last, output_size), last),
                 uinit(kb_, (1, output_size), last), False))
        self.output_size = (output_size if output_size is not None
                            else (hidden_sizes[-1] if hidden_sizes
                                  else self.conv_out_size))

        self._forward = jax.jit(self._forward_impl)

    def _forward_impl(self, x):
        B = x.shape[0]
        c, h, w = self.in_shape
        # Free reshape: NCHW -> channels-major flattened spatial [B, C, H*W].
        x_flat = x.reshape(B, c, h * w)
        feat = conv_stack_forward(x_flat, self.conv_layer_params,
                                  self.conv_layer_meta,
                                  self.conv_out_channels, self.conv_out_hw)
        # Free reshape; [C, H*W] row-major == torch's (C, H, W) .view flatten.
        feat = feat.reshape(B, self.conv_out_size)
        if not self.mlp_params:
            return feat
        return mlp_forward(feat, self.mlp_params)

    def __call__(self, x):
        """x: [B, C, H, W] float32 -> [B, output_size]."""
        return self._forward(x)


if __name__ == "__main__":
    key = jax.random.PRNGKey(0)
    k_in, k_model = jax.random.split(key)

    # Small config: image (C=4, H=16, W=16), two conv layers, one hidden layer.
    image_shape = (4, 16, 16)
    model = Conv2dHeadModelPallas(
        k_model,
        image_shape=image_shape,
        channels=[8, 16],
        kernel_sizes=[3, 3],
        strides=[2, 2],
        paddings=[1, 1],
        hidden_sizes=[32],
        output_size=16,
        use_maxpool=False,
    )

    B = 2
    x = jax.random.normal(k_in, (B,) + image_shape, dtype=jnp.float32)

    out = model(x)
    out = jax.block_until_ready(out)
    assert out.shape == (B, model.output_size), out.shape
    assert bool(jnp.all(jnp.isfinite(out)))
    print("KERNEL_OK")
</pallas_src>

<mosaic_0001>
module attributes {stable_mosaic.version = 11 : i64} {
  func.func @_mlp_kernel(%arg0: i32, %arg1: memref<2x256xf32, #tpu.memory_space<vmem>>, %arg2: memref<256x32xf32, #tpu.memory_space<vmem>>, %arg3: memref<1x32xf32, #tpu.memory_space<vmem>>, %arg4: memref<32x16xf32, #tpu.memory_space<vmem>>, %arg5: memref<1x16xf32, #tpu.memory_space<vmem>>, %arg6: memref<2x16xf32, #tpu.memory_space<vmem>>) attributes {dimension_semantics = [#tpu.dimension_semantics<parallel>], iteration_bounds = array<i64: 1>, scalar_prefetch = 0 : i64, scratch_operands = 0 : i64, tpu.core_type = #tpu.core_type<tc>, window_params = [{transform_indices = @transform_0, window_bounds = array<i64: 2, 256>}, {pipeline_mode = #tpu.pipeline_mode<synchronous>, transform_indices = @transform_1, window_bounds = array<i64: 256, 32>}, {pipeline_mode = #tpu.pipeline_mode<synchronous>, transform_indices = @transform_2, window_bounds = array<i64: 1, 32>}, {pipeline_mode = #tpu.pipeline_mode<synchronous>, transform_indices = @transform_3, window_bounds = array<i64: 32, 16>}, {pipeline_mode = #tpu.pipeline_mode<synchronous>, transform_indices = @transform_4, window_bounds = array<i64: 1, 16>}, {transform_indices = @transform_5, window_bounds = array<i64: 2, 16>}]} {
    %c0 = arith.constant 0 : index
    %c0_0 = arith.constant 0 : index
    %0 = vector.load %arg1[%c0, %c0_0] : memref<2x256xf32, #tpu.memory_space<vmem>>, vector<2x256xf32>
    %c0_1 = arith.constant 0 : index
    %c0_2 = arith.constant 0 : index
    %1 = vector.load %arg2[%c0_1, %c0_2] : memref<256x32xf32, #tpu.memory_space<vmem>>, vector<256x32xf32>
    %c0_3 = arith.constant 0 : index
    %c0_4 = arith.constant 0 : index
    %2 = vector.load %arg3[%c0_3, %c0_4] : memref<1x32xf32, #tpu.memory_space<vmem>>, vector<1x32xf32>
    %cst = arith.constant dense<0.000000e+00> : vector<2x32xf32>
    %3 = tpu.matmul %0, %1, %cst {dimension_numbers = #tpu.dot_dimension_numbers<[1], [0], [0], [1], [0, 0, 1, 1], [], []>} : vector<2x256xf32>, vector<256x32xf32>, vector<2x32xf32> -> vector<2x32xf32>
    %4 = vector.broadcast %2 : vector<1x32xf32> to vector<2x32xf32>
    %5 = arith.addf %3, %4 : vector<2x32xf32>
    %cst_5 = arith.constant 0.000000e+00 : f32
    %6 = vector.broadcast %cst_5 : f32 to vector<2x32xf32>
    %7 = arith.maximumf %5, %6 : vector<2x32xf32>
    %c0_6 = arith.constant 0 : index
    %c0_7 = arith.constant 0 : index
    %8 = vector.load %arg4[%c0_6, %c0_7] : memref<32x16xf32, #tpu.memory_space<vmem>>, vector<32x16xf32>
    %c0_8 = arith.constant 0 : index
    %c0_9 = arith.constant 0 : index
    %9 = vector.load %arg5[%c0_8, %c0_9] : memref<1x16xf32, #tpu.memory_space<vmem>>, vector<1x16xf32>
    %cst_10 = arith.constant dense<0.000000e+00> : vector<2x16xf32>
    %10 = tpu.matmul %7, %8, %cst_10 {dimension_numbers = #tpu.dot_dimension_numbers<[1], [0], [0], [1], [0, 0, 1, 1], [], []>} : vector<2x32xf32>, vector<32x16xf32>, vector<2x16xf32> -> vector<2x16xf32>
    %11 = vector.broadcast %9 : vector<1x16xf32> to vector<2x16xf32>
    %12 = arith.addf %10, %11 : vector<2x16xf32>
    %c0_11 = arith.constant 0 : index
    %c0_12 = arith.constant 0 : index
    %13 = vector.load %arg6[%c0_11, %c0_12] : memref<2x16xf32, #tpu.memory_space<vmem>>, vector<2x16xf32>
    tpu.vector_store %arg6[%c0_11, %c0_12], %12 {strides = array<i32>} : memref<2x16xf32, #tpu.memory_space<vmem>>, vector<2x16xf32>,
    return
  }
  func.func @transform_0(%arg0: i32) -> (i32, i32) {
    %c0_i32 = arith.constant 0 : i32
    %c0_i32_0 = arith.constant 0 : i32
    return %arg0, %c0_i32 : i32, i32
  }
  func.func @transform_1(%arg0: i32) -> (i32, i32) {
    %c0_i32 = arith.constant 0 : i32
    %c0_i32_0 = arith.constant 0 : i32
    %c0_i32_1 = arith.constant 0 : i32
    return %c0_i32, %c0_i32_0 : i32, i32
  }
  func.func @transform_2(%arg0: i32) -> (i32, i32) {
    %c0_i32 = arith.constant 0 : i32
    %c0_i32_0 = arith.constant 0 : i32
    %c0_i32_1 = arith.constant 0 : i32
    return %c0_i32, %c0_i32_0 : i32, i32
  }
  func.func @transform_3(%arg0: i32) -> (i32, i32) {
    %c0_i32 = arith.constant 0 : i32
    %c0_i32_0 = arith.constant 0 : i32
    %c0_i32_1 = arith.constant 0 : i32
    return %c0_i32, %c0_i32_0 : i32, i32
  }
  func.func @transform_4(%arg0: i32) -> (i32, i32) {
    %c0_i32 = arith.constant 0 : i32
    %c0_i32_0 = arith.constant 0 : i32
    %c0_i32_1 = arith.constant 0 : i32
    return %c0_i32, %c0_i32_0 : i32, i32
  }
  func.func @transform_5(%arg0: i32) -> (i32, i32) {
    %c0_i32 = arith.constant 0 : i32
    %c0_i32_0 = arith.constant 0 : i32
    return %arg0, %c0_i32 : i32, i32
  }
}

module attributes {stable_mosaic.version = 11 : i64} {
  func.func @_conv_stack_kernel(%arg0: i32, %arg1: memref<1x4x256xf32, #tpu.memory_space<vmem>>, %arg2: memref<9x256x64xf32, #tpu.memory_space<vmem>>, %arg3: memref<9x8x4xf32, #tpu.memory_space<vmem>>, %arg4: memref<8x1xf32, #tpu.memory_space<vmem>>, %arg5: memref<9x64x16xf32, #tpu.memory_space<vmem>>, %arg6: memref<9x16x8xf32, #tpu.memory_space<vmem>>, %arg7: memref<16x1xf32, #tpu.memory_space<vmem>>, %arg8: memref<1x16x16xf32, #tpu.memory_space<vmem>>) attributes {dimension_semantics = [#tpu.dimension_semantics<parallel>], iteration_bounds = array<i64: 2>, scalar_prefetch = 0 : i64, scratch_operands = 0 : i64, tpu.core_type = #tpu.core_type<tc>, window_params = [{transform_indices = @transform_0, window_bounds = array<i64: 1, 4, 256>}, {pipeline_mode = #tpu.pipeline_mode<synchronous>, transform_indices = @transform_1, window_bounds = array<i64: 9, 256, 64>}, {pipeline_mode = #tpu.pipeline_mode<synchronous>, transform_indices = @transform_2, window_bounds = array<i64: 9, 8, 4>}, {pipeline_mode = #tpu.pipeline_mode<synchronous>, transform_indices = @transform_3, window_bounds = array<i64: 8, 1>}, {pipeline_mode = #tpu.pipeline_mode<synchronous>, transform_indices = @transform_4, window_bounds = array<i64: 9, 64, 16>}, {pipeline_mode = #tpu.pipeline_mode<synchronous>, transform_indices = @transform_5, window_bounds = array<i64: 9, 16, 8>}, {pipeline_mode = #tpu.pipeline_mode<synchronous>, transform_indices = @transform_6, window_bounds = array<i64: 16, 1>}, {transform_indices = @transform_7, window_bounds = array<i64: 1, 16, 16>}]} {
    %c0 = arith.constant 0 : index
    %c0_0 = arith.constant 0 : index
    %c0_1 = arith.constant 0 : index
    %0 = vector.load %arg1[%c0, %c0_0, %c0_1] : memref<1x4x256xf32, #tpu.memory_space<vmem>>, vector<1x4x256xf32>
    %1 = vector.shape_cast %0 : vector<1x4x256xf32> to vector<4x256xf32>
    %c0_2 = arith.constant 0 : index
    %c0_3 = arith.constant 0 : index
    %c0_4 = arith.constant 0 : index
    %2 = vector.load %arg2[%c0_2, %c0_3, %c0_4] : memref<9x256x64xf32, #tpu.memory_space<vmem>>, vector<1x256x64xf32>
    %3 = vector.shape_cast %2 : vector<1x256x64xf32> to vector<256x64xf32>
    %cst = arith.constant dense<0.000000e+00> : vector<4x64xf32>
    %4 = tpu.matmul %1, %3, %cst {dimension_numbers = #tpu.dot_dimension_numbers<[1], [0], [0], [1], [0, 0, 1, 1], [], []>} : vector<4x256xf32>, vector<256x64xf32>, vector<4x64xf32> -> vector<4x64xf32>
    %c0_5 = arith.constant 0 : index
    %c0_6 = arith.constant 0 : index
    %c0_7 = arith.constant 0 : index
    %5 = vector.load %arg3[%c0_5, %c0_6, %c0_7] : memref<9x8x4xf32, #tpu.memory_space<vmem>>, vector<1x8x4xf32>
    %6 = vector.shape_cast %5 : vector<1x8x4xf32> to vector<8x4xf32>
    %cst_8 = arith.constant dense<0.000000e+00> : vector<8x64xf32>
    %7 = tpu.matmul %6, %4, %cst_8 {dimension_numbers = #tpu.dot_dimension_numbers<[1], [0], [0], [1], [0, 0, 1, 1], [], []>} : vector<8x4xf32>, vector<4x64xf32>, vector<8x64xf32> -> vector<8x64xf32>
    %c1 = arith.constant 1 : index
    %c0_9 = arith.constant 0 : index
    %c0_10 = arith.constant 0 : index
    %8 = vector.load %arg2[%c1, %c0_9, %c0_10] : memref<9x256x64xf32, #tpu.memory_space<vmem>>, vector<1x256x64xf32>
    %9 = vector.shape_cast %8 : vector<1x256x64xf32> to vector<256x64xf32>
    %cst_11 = arith.constant dense<0.000000e+00> : vector<4x64xf32>
    %10 = tpu.matmul %1, %9, %cst_11 {dimension_numbers = #tpu.dot_dimension_numbers<[1], [0], [0], [1], [0, 0, 1, 1], [], []>} : vector<4x256xf32>, vector<256x64xf32>, vector<4x64xf32> -> vector<4x64xf32>
    %c1_12 = arith.constant 1 : index
    %c0_13 = arith.constant 0 : index
    %c0_14 = arith.constant 0 : index
    %11 = vector.load %arg3[%c1_12, %c0_13, %c0_14] : memref<9x8x4xf32, #tpu.memory_space<vmem>>, vector<1x8x4xf32>
    %12 = vector.shape_cast %11 : vector<1x8x4xf32> to vector<8x4xf32>
    %cst_15 = arith.constant dense<0.000000e+00> : vector<8x64xf32>
    %13 = tpu.matmul %12, %10, %cst_15 {dimension_numbers = #tpu.dot_dimension_numbers<[1], [0], [0], [1], [0, 0, 1, 1], [], []>} : vector<8x4xf32>, vector<4x64xf32>, vector<8x64xf32> -> vector<8x64xf32>
    %14 = arith.addf %7, %13 : vector<8x64xf32>
    %c2 = arith.constant 2 : index
    %c0_16 = arith.constant 0 : index
    %c0_17 = arith.constant 0 : index
    %15 = vector.load %arg2[%c2, %c0_16, %c0_17] : memref<9x256x64xf32, #tpu.memory_space<vmem>>, vector<1x256x64xf32>
    %16 = vector.shape_cast %15 : vector<1x256x64xf32> to vector<256x64xf32>
    %cst_18 = arith.constant dense<0.000000e+00> : vector<4x64xf32>
    %17 = tpu.matmul %1, %16, %cst_18 {dimension_numbers = #tpu.dot_dimension_numbers<[1], [0], [0], [1], [0, 0, 1, 1], [], []>} : vector<4x256xf32>, vector<256x64xf32>, vector<4x64xf32> -> vector<4x64xf32>
    %c2_19 = arith.constant 2 : index
    %c0_20 = arith.constant 0 : index
    %c0_21 = arith.constant 0 : index
    %18 = vector.load %arg3[%c2_19, %c0_20, %c0_21] : memref<9x8x4xf32, #tpu.memory_space<vmem>>, vector<1x8x4xf32>
    %19 = vector.shape_cast %18 : vector<1x8x4xf32> to vector<8x4xf32>
    %cst_22 = arith.constant dense<0.000000e+00> : vector<8x64xf32>
    %20 = tpu.matmul %19, %17, %cst_22 {dimension_numbers = #tpu.dot_dimension_numbers<[1], [0], [0], [1], [0, 0, 1, 1], [], []>} : vector<8x4xf32>, vector<4x64xf32>, vector<8x64xf32> -> vector<8x64xf32>
    %21 = arith.addf %14, %20 : vector<8x64xf32>
    %c3 = arith.constant 3 : index
    %c0_23 = arith.constant 0 : index
    %c0_24 = arith.constant 0 : index
    %22 = vector.load %arg2[%c3, %c0_23, %c0_24] : memref<9x256x64xf32, #tpu.memory_space<vmem>>, vector<1x256x64xf32>
    %23 = vector.shape_cast %22 : vector<1x256x64xf32> to vector<256x64xf32>
    %cst_25 = arith.constant dense<0.000000e+00> : vector<4x64xf32>
    %24 = tpu.matmul %1, %23, %cst_25 {dimension_numbers = #tpu.dot_dimension_numbers<[1], [0], [0], [1], [0, 0, 1, 1], [], []>} : vector<4x256xf32>, vector<256x64xf32>, vector<4x64xf32> -> vector<4x64xf32>
    %c3_26 = arith.constant 3 : index
    %c0_27 = arith.constant 0 : index
    %c0_28 = arith.constant 0 : index
    %25 = vector.load %arg3[%c3_26, %c0_27, %c0_28] : memref<9x8x4xf32, #tpu.memory_space<vmem>>, vector<1x8x4xf32>
    %26 = vector.shape_cast %25 : vector<1x8x4xf32> to vector<8x4xf32>
    %cst_29 = arith.constant dense<0.000000e+00> : vector<8x64xf32>
    %27 = tpu.matmul %26, %24, %cst_29 {dimension_numbers = #tpu.dot_dimension_numbers<[1], [0], [0], [1], [0, 0, 1, 1], [], []>} : vector<8x4xf32>, vector<4x64xf32>, vector<8x64xf32> -> vector<8x64xf32>
    %28 = arith.addf %21, %27 : vector<8x64xf32>
    %c4 = arith.constant 4 : index
    %c0_30 = arith.constant 0 : index
    %c0_31 = arith.constant 0 : index
    %29 = vector.load %arg2[%c4, %c0_30, %c0_31] : memref<9x256x64xf32, #tpu.memory_space<vmem>>, vector<1x256x64xf32>
    %30 = vector.shape_cast %29 : vector<1x256x64xf32> to vector<256x64xf32>
    %cst_32 = arith.constant dense<0.000000e+00> : vector<4x64xf32>
    %31 = tpu.matmul %1, %30, %cst_32 {dimension_numbers = #tpu.dot_dimension_numbers<[1], [0], [0], [1], [0, 0, 1, 1], [], []>} : vector<4x256xf32>, vector<256x64xf32>, vector<4x64xf32> -> vector<4x64xf32>
    %c4_33 = arith.constant 4 : index
    %c0_34 = arith.constant 0 : index
    %c0_35 = arith.constant 0 : index
    %32 = vector.load %arg3[%c4_33, %c0_34, %c0_35] : memref<9x8x4xf32, #tpu.memory_space<vmem>>, vector<1x8x4xf32>
    %33 = vector.shape_cast %32 : vector<1x8x4xf32> to vector<8x4xf32>
    %cst_36 = arith.constant dense<0.000000e+00> : vector<8x64xf32>
    %34 = tpu.matmul %33, %31, %cst_36 {dimension_numbers = #tpu.dot_dimension_numbers<[1], [0], [0], [1], [0, 0, 1, 1], [], []>} : vector<8x4xf32>, vector<4x64xf32>, vector<8x64xf32> -> vector<8x64xf32>
    %35 = arith.addf %28, %34 : vector<8x64xf32>
    %c5 = arith.constant 5 : index
    %c0_37 = arith.constant 0 : index
    %c0_38 = arith.constant 0 : index
    %36 = vector.load %arg2[%c5, %c0_37, %c0_38] : memref<9x256x64xf32, #tpu.memory_space<vmem>>, vector<1x256x64xf32>
    %37 = vector.shape_cast %36 : vector<1x256x64xf32> to vector<256x64xf32>
    %cst_39 = arith.constant dense<0.000000e+00> : vector<4x64xf32>
    %38 = tpu.matmul %1, %37, %cst_39 {dimension_numbers = #tpu.dot_dimension_numbers<[1], [0], [0], [1], [0, 0, 1, 1], [], []>} : vector<4x256xf32>, vector<256x64xf32>, vector<4x64xf32> -> vector<4x64xf32>
    %c5_40 = arith.constant 5 : index
    %c0_41 = arith.constant 0 : index
    %c0_42 = arith.constant 0 : index
    %39 = vector.load %arg3[%c5_40, %c0_41, %c0_42] : memref<9x8x4xf32, #tpu.memory_space<vmem>>, vector<1x8x4xf32>
    %40 = vector.shape_cast %39 : vector<1x8x4xf32> to vector<8x4xf32>
    %cst_43 = arith.constant dense<0.000000e+00> : vector<8x64xf32>
    %41 = tpu.matmul %40, %38, %cst_43 {dimension_numbers = #tpu.dot_dimension_numbers<[1], [0], [0], [1], [0, 0, 1, 1], [], []>} : vector<8x4xf32>, vector<4x64xf32>, vector<8x64xf32> -> vector<8x64xf32>
    %42 = arith.addf %35, %41 : vector<8x64xf32>
    %c6 = arith.constant 6 : index
    %c0_44 = arith.constant 0 : index
    %c0_45 = arith.constant 0 : index
    %43 = vector.load %arg2[%c6, %c0_44, %c0_45] : memref<9x256x64xf32, #tpu.memory_space<vmem>>, vector<1x256x64xf32>
    %44 = vector.shape_cast %43 : vector<1x256x64xf32> to vector<256x64xf32>
    %cst_46 = arith.constant dense<0.000000e+00> : vector<4x64xf32>
    %45 = tpu.matmul %1, %44, %cst_46 {dimension_numbers = #tpu.dot_dimension_numbers<[1], [0], [0], [1], [0, 0, 1, 1], [], []>} : vector<4x256xf32>, vector<256x64xf32>, vector<4x64xf32> -> vector<4x64xf32>
    %c6_47 = arith.constant 6 : index
    %c0_48 = arith.constant 0 : index
    %c0_49 = arith.constant 0 : index
    %46 = vector.load %arg3[%c6_47, %c0_48, %c0_49] : memref<9x8x4xf32, #tpu.memory_space<vmem>>, vector<1x8x4xf32>
    %47 = vector.shape_cast %46 : vector<1x8x4xf32> to vector<8x4xf32>
    %cst_50 = arith.constant dense<0.000000e+00> : vector<8x64xf32>
    %48 = tpu.matmul %47, %45, %cst_50 {dimension_numbers = #tpu.dot_dimension_numbers<[1], [0], [0], [1], [0, 0, 1, 1], [], []>} : vector<8x4xf32>, vector<4x64xf32>, vector<8x64xf32> -> vector<8x64xf32>
    %49 = arith.addf %42, %48 : vector<8x64xf32>
    %c7 = arith.constant 7 : index
    %c0_51 = arith.constant 0 : index
    %c0_52 = arith.constant 0 : index
    %50 = vector.load %arg2[%c7, %c0_51, %c0_52] : memref<9x256x64xf32, #tpu.memory_space<vmem>>, vector<1x256x64xf32>
    %51 = vector.shape_cast %50 : vector<1x256x64xf32> to vector<256x64xf32>
    %cst_53 = arith.constant dense<0.000000e+00> : vector<4x64xf32>
    %52 = tpu.matmul %1, %51, %cst_53 {dimension_numbers = #tpu.dot_dimension_numbers<[1], [0], [0], [1], [0, 0, 1, 1], [], []>} : vector<4x256xf32>, vector<256x64xf32>, vector<4x64xf32> -> vector<4x64xf32>
    %c7_54 = arith.constant 7 : index
    %c0_55 = arith.constant 0 : index
    %c0_56 = arith.constant 0 : index
    %53 = vector.load %arg3[%c7_54, %c0_55, %c0_56] : memref<9x8x4xf32, #tpu.memory_space<vmem>>, vector<1x8x4xf32>
    %54 = vector.shape_cast %53 : vector<1x8x4xf32> to vector<8x4xf32>
    %cst_57 = arith.constant dense<0.000000e+00> : vector<8x64xf32>
    %55 = tpu.matmul %54, %52, %cst_57 {dimension_numbers = #tpu.dot_dimension_numbers<[1], [0], [0], [1], [0, 0, 1, 1], [], []>} : vector<8x4xf32>, vector<4x64xf32>, vector<8x64xf32> -> vector<8x64xf32>
    %56 = arith.addf %49, %55 : vector<8x64xf32>
    %c8 = arith.constant 8 : index
    %c0_58 = arith.constant 0 : index
    %c0_59 = arith.constant 0 : index
    %57 = vector.load %arg2[%c8, %c0_58, %c0_59] : memref<9x256x64xf32, #tpu.memory_space<vmem>>, vector<1x256x64xf32>
    %58 = vector.shape_cast %57 : vector<1x256x64xf32> to vector<256x64xf32>
    %cst_60 = arith.constant dense<0.000000e+00> : vector<4x64xf32>
    %59 = tpu.matmul %1, %58, %cst_60 {dimension_numbers = #tpu.dot_dimension_numbers<[1], [0], [0], [1], [0, 0, 1, 1], [], []>} : vector<4x256xf32>, vector<256x64xf32>, vector<4x64xf32> -> vector<4x64xf32>
    %c8_61 = arith.constant 8 : index
    %c0_62 = arith.constant 0 : index
    %c0_63 = arith.constant 0 : index
    %60 = vector.load %arg3[%c8_61, %c0_62, %c0_63] : memref<9x8x4xf32, #tpu.memory_space<vmem>>, vector<1x8x4xf32>
    %61 = vector.shape_cast %60 : vector<1x8x4xf32> to vector<8x4xf32>
    %cst_64 = arith.constant dense<0.000000e+00> : vector<8x64xf32>
    %62 = tpu.matmul %61, %59, %cst_64 {dimension_numbers = #tpu.dot_dimension_numbers<[1], [0], [0], [1], [0, 0, 1, 1], [], []>} : vector<8x4xf32>, vector<4x64xf32>, vector<8x64xf32> -> vector<8x64xf32>
    %63 = arith.addf %56, %62 : vector<8x64xf32>
    %c0_65 = arith.constant 0 : index
    %c0_66 = arith.constant 0 : index
    %64 = vector.load %arg4[%c0_65, %c0_66] : memref<8x1xf32, #tpu.memory_space<vmem>>, vector<8x1xf32>
    %65 = vector.broadcast %64 : vector<8x1xf32> to vector<8x64xf32>
    %66 = arith.addf %63, %65 : vector<8x64xf32>
    %cst_67 = arith.constant 0.000000e+00 : f32
    %67 = vector.broadcast %cst_67 : f32 to vector<8x64xf32>
    %68 = arith.maximumf %66, %67 : vector<8x64xf32>
    %c0_68 = arith.constant 0 : index
    %c0_69 = arith.constant 0 : index
    %c0_70 = arith.constant 0 : index
    %69 = vector.load %arg5[%c0_68, %c0_69, %c0_70] : memref<9x64x16xf32, #tpu.memory_space<vmem>>, vector<1x64x16xf32>
    %70 = vector.shape_cast %69 : vector<1x64x16xf32> to vector<64x16xf32>
    %cst_71 = arith.constant dense<0.000000e+00> : vector<8x16xf32>
    %71 = tpu.matmul %68, %70, %cst_71 {dimension_numbers = #tpu.dot_dimension_numbers<[1], [0], [0], [1], [0, 0, 1, 1], [], []>} : vector<8x64xf32>, vector<64x16xf32>, vector<8x16xf32> -> vector<8x16xf32>
    %c0_72 = arith.constant 0 : index
    %c0_73 = arith.constant 0 : index
    %c0_74 = arith.constant 0 : index
    %72 = vector.load %arg6[%c0_72, %c0_73, %c0_74] : memref<9x16x8xf32, #tpu.memory_space<vmem>>, vector<1x16x8xf32>
    %73 = vector.shape_cast %72 : vector<1x16x8xf32> to vector<16x8xf32>
    %cst_75 = arith.constant dense<0.000000e+00> : vector<16x16xf32>
    %74 = tpu.matmul %73, %71, %cst_75 {dimension_numbers = #tpu.dot_dimension_numbers<[1], [0], [0], [1], [0, 0, 1, 1], [], []>} : vector<16x8xf32>, vector<8x16xf32>, vector<16x16xf32> -> vector<16x16xf32>
    %c1_76 = arith.constant 1 : index
    %c0_77 = arith.constant 0 : index
    %c0_78 = arith.constant 0 : index
    %75 = vector.load %arg5[%c1_76, %c0_77, %c0_78] : memref<9x64x16xf32, #tpu.memory_space<vmem>>, vector<1x64x16xf32>
    %76 = vector.shape_cast %75 : vector<1x64x16xf32> to vector<64x16xf32>
    %cst_79 = arith.constant dense<0.000000e+00> : vector<8x16xf32>
    %77 = tpu.matmul %68, %76, %cst_79 {dimension_numbers = #tpu.dot_dimension_numbers<[1], [0], [0], [1], [0, 0, 1, 1], [], []>} : vector<8x64xf32>, vector<64x16xf32>, vector<8x16xf32> -> vector<8x16xf32>
    %c1_80 = arith.constant 1 : index
    %c0_81 = arith.constant 0 : index
    %c0_82 = arith.constant 0 : index
    %78 = vector.load %arg6[%c1_80, %c0_81, %c0_82] : memref<9x16x8xf32, #tpu.memory_space<vmem>>, vector<1x16x8xf32>
    %79 = vector.shape_cast %78 : vector<1x16x8xf32> to vector<16x8xf32>
    %cst_83 = arith.constant dense<0.000000e+00> : vector<16x16xf32>
    %80 = tpu.matmul %79, %77, %cst_83 {dimension_numbers = #tpu.dot_dimension_numbers<[1], [0], [0], [1], [0, 0, 1, 1], [], []>} : vector<16x8xf32>, vector<8x16xf32>, vector<16x16xf32> -> vector<16x16xf32>
    %81 = arith.addf %74, %80 : vector<16x16xf32>
    %c2_84 = arith.constant 2 : index
    %c0_85 = arith.constant 0 : index
    %c0_86 = arith.constant 0 : index
    %82 = vector.load %arg5[%c2_84, %c0_85, %c0_86] : memref<9x64x16xf32, #tpu.memory_space<vmem>>, vector<1x64x16xf32>
    %83 = vector.shape_cast %82 : vector<1x64x16xf32> to vector<64x16xf32>
    %cst_87 = arith.constant dense<0.000000e+00> : vector<8x16xf32>
    %84 = tpu.matmul %68, %83, %cst_87 {dimension_numbers = #tpu.dot_dimension_numbers<[1], [0], [0], [1], [0, 0, 1, 1], [], []>} : vector<8x64xf32>, vector<64x16xf32>, vector<8x16xf32> -> vector<8x16xf32>
    %c2_88 = arith.constant 2 : index
    %c0_89 = arith.constant 0 : index
    %c0_90 = arith.constant 0 : index
    %85 = vector.load %arg6[%c2_88, %c0_89, %c0_90] : memref<9x16x8xf32, #tpu.memory_space<vmem>>, vector<1x16x8xf32>
    %86 = vector.shape_cast %85 : vector<1x16x8xf32> to vector<16x8xf32>
    %cst_91 = arith.constant dense<0.000000e+00> : vector<16x16xf32>
    %87 = tpu.matmul %86, %84, %cst_91 {dimension_numbers = #tpu.dot_dimension_numbers<[1], [0], [0], [1], [0, 0, 1, 1], [], []>} : vector<16x8xf32>, vector<8x16xf32>, vector<16x16xf32> -> vector<16x16xf32>
    %88 = arith.addf %81, %87 : vector<16x16xf32>
    %c3_92 = arith.constant 3 : index
    %c0_93 = arith.constant 0 : index
    %c0_94 = arith.constant 0 : index
    %89 = vector.load %arg5[%c3_92, %c0_93, %c0_94] : memref<9x64x16xf32, #tpu.memory_space<vmem>>, vector<1x64x16xf32>
    %90 = vector.shape_cast %89 : vector<1x64x16xf32> to vector<64x16xf32>
    %cst_95 = arith.constant dense<0.000000e+00> : vector<8x16xf32>
    %91 = tpu.matmul %68, %90, %cst_95 {dimension_numbers = #tpu.dot_dimension_numbers<[1], [0], [0], [1], [0, 0, 1, 1], [], []>} : vector<8x64xf32>, vector<64x16xf32>, vector<8x16xf32> -> vector<8x16xf32>
    %c3_96 = arith.constant 3 : index
    %c0_97 = arith.constant 0 : index
    %c0_98 = arith.constant 0 : index
    %92 = vector.load %arg6[%c3_96, %c0_97, %c0_98] : memref<9x16x8xf32, #tpu.memory_space<vmem>>, vector<1x16x8xf32>
    %93 = vector.shape_cast %92 : vector<1x16x8xf32> to vector<16x8xf32>
    %cst_99 = arith.constant dense<0.000000e+00> : vector<16x16xf32>
    %94 = tpu.matmul %93, %91, %cst_99 {dimension_numbers = #tpu.dot_dimension_numbers<[1], [0], [0], [1], [0, 0, 1, 1], [], []>} : vector<16x8xf32>, vector<8x16xf32>, vector<16x16xf32> -> vector<16x16xf32>
    %95 = arith.addf %88, %94 : vector<16x16xf32>
    %c4_100 = arith.constant 4 : index
    %c0_101 = arith.constant 0 : index
    %c0_102 = arith.constant 0 : index
    %96 = vector.load %arg5[%c4_100, %c0_101, %c0_102] : memref<9x64x16xf32, #tpu.memory_space<vmem>>, vector<1x64x16xf32>
    %97 = vector.shape_cast %96 : vector<1x64x16xf32> to vector<64x16xf32>
    %cst_103 = arith.constant dense<0.000000e+00> : vector<8x16xf32>
    %98 = tpu.matmul %68, %97, %cst_103 {dimension_numbers = #tpu.dot_dimension_numbers<[1], [0], [0], [1], [0, 0, 1, 1], [], []>} : vector<8x64xf32>, vector<64x16xf32>, vector<8x16xf32> -> vector<8x16xf32>
    %c4_104 = arith.constant 4 : index
    %c0_105 = arith.constant 0 : index
    %c0_106 = arith.constant 0 : index
    %99 = vector.load %arg6[%c4_104, %c0_105, %c0_106] : memref<9x16x8xf32, #tpu.memory_space<vmem>>, vector<1x16x8xf32>
    %100 = vector.shape_cast %99 : vector<1x16x8xf32> to vector<16x8xf32>
    %cst_107 = arith.constant dense<0.000000e+00> : vector<16x16xf32>
    %101 = tpu.matmul %100, %98, %cst_107 {dimension_numbers = #tpu.dot_dimension_numbers<[1], [0], [0], [1], [0, 0, 1, 1], [], []>} : vector<16x8xf32>, vector<8x16xf32>, vector<16x16xf32> -> vector<16x16xf32>
    %102 = arith.addf %95, %101 : vector<16x16xf32>
    %c5_108 = arith.constant 5 : index
    %c0_109 = arith.constant 0 : index
    %c0_110 = arith.constant 0 : index
    %103 = vector.load %arg5[%c5_108, %c0_109, %c0_110] : memref<9x64x16xf32, #tpu.memory_space<vmem>>, vector<1x64x16xf32>
    %104 = vector.shape_cast %103 : vector<1x64x16xf32> to vector<64x16xf32>
    %cst_111 = arith.constant dense<0.000000e+00> : vector<8x16xf32>
    %105 = tpu.matmul %68, %104, %cst_111 {dimension_numbers = #tpu.dot_dimension_numbers<[1], [0], [0], [1], [0, 0, 1, 1], [], []>} : vector<8x64xf32>, vector<64x16xf32>, vector<8x16xf32> -> vector<8x16xf32>
    %c5_112 = arith.constant 5 : index
    %c0_113 = arith.constant 0 : index
    %c0_114 = arith.constant 0 : index
    %106 = vector.load %arg6[%c5_112, %c0_113, %c0_114] : memref<9x16x8xf32, #tpu.memory_space<vmem>>, vector<1x16x8xf32>
    %107 = vector.shape_cast %106 : vector<1x16x8xf32> to vector<16x8xf32>
    %cst_115 = arith.constant dense<0.000000e+00> : vector<16x16xf32>
    %108 = tpu.matmul %107, %105, %cst_115 {dimension_numbers = #tpu.dot_dimension_numbers<[1], [0], [0], [1], [0, 0, 1, 1], [], []>} : vector<16x8xf32>, vector<8x16xf32>, vector<16x16xf32> -> vector<16x16xf32>
    %109 = arith.addf %102, %108 : vector<16x16xf32>
    %c6_116 = arith.constant 6 : index
    %c0_117 = arith.constant 0 : index
    %c0_118 = arith.constant 0 : index
    %110 = vector.load %arg5[%c6_116, %c0_117, %c0_118] : memref<9x64x16xf32, #tpu.memory_space<vmem>>, vector<1x64x16xf32>
    %111 = vector.shape_cast %110 : vector<1x64x16xf32> to vector<64x16xf32>
    %cst_119 = arith.constant dense<0.000000e+00> : vector<8x16xf32>
    %112 = tpu.matmul %68, %111, %cst_119 {dimension_numbers = #tpu.dot_dimension_numbers<[1], [0], [0], [1], [0, 0, 1, 1], [], []>} : vector<8x64xf32>, vector<64x16xf32>, vector<8x16xf32> -> vector<8x16xf32>
    %c6_120 = arith.constant 6 : index
    %c0_121 = arith.constant 0 : index
    %c0_122 = arith.constant 0 : index
    %113 = vector.load %arg6[%c6_120, %c0_121, %c0_122] : memref<9x16x8xf32, #tpu.memory_space<vmem>>, vector<1x16x8xf32>
    %114 = vector.shape_cast %113 : vector<1x16x8xf32> to vector<16x8xf32>
    %cst_123 = arith.constant dense<0.000000e+00> : vector<16x16xf32>
    %115 = tpu.matmul %114, %112, %cst_123 {dimension_numbers = #tpu.dot_dimension_numbers<[1], [0], [0], [1], [0, 0, 1, 1], [], []>} : vector<16x8xf32>, vector<8x16xf32>, vector<16x16xf32> -> vector<16x16xf32>
    %116 = arith.addf %109, %115 : vector<16x16xf32>
    %c7_124 = arith.constant 7 : index
    %c0_125 = arith.constant 0 : index
    %c0_126 = arith.constant 0 : index
    %117 = vector.load %arg5[%c7_124, %c0_125, %c0_126] : memref<9x64x16xf32, #tpu.memory_space<vmem>>, vector<1x64x16xf32>
    %118 = vector.shape_cast %117 : vector<1x64x16xf32> to vector<64x16xf32>
    %cst_127 = arith.constant dense<0.000000e+00> : vector<8x16xf32>
    %119 = tpu.matmul %68, %118, %cst_127 {dimension_numbers = #tpu.dot_dimension_numbers<[1], [0], [0], [1], [0, 0, 1, 1], [], []>} : vector<8x64xf32>, vector<64x16xf32>, vector<8x16xf32> -> vector<8x16xf32>
    %c7_128 = arith.constant 7 : index
    %c0_129 = arith.constant 0 : index
    %c0_130 = arith.constant 0 : index
    %120 = vector.load %arg6[%c7_128, %c0_129, %c0_130] : memref<9x16x8xf32, #tpu.memory_space<vmem>>, vector<1x16x8xf32>
    %121 = vector.shape_cast %120 : vector<1x16x8xf32> to vector<16x8xf32>
    %cst_131 = arith.constant dense<0.000000e+00> : vector<16x16xf32>
    %122 = tpu.matmul %121, %119, %cst_131 {dimension_numbers = #tpu.dot_dimension_numbers<[1], [0], [0], [1], [0, 0, 1, 1], [], []>} : vector<16x8xf32>, vector<8x16xf32>, vector<16x16xf32> -> vector<16x16xf32>
    %123 = arith.addf %116, %122 : vector<16x16xf32>
    %c8_132 = arith.constant 8 : index
    %c0_133 = arith.constant 0 : index
    %c0_134 = arith.constant 0 : index
    %124 = vector.load %arg5[%c8_132, %c0_133, %c0_134] : memref<9x64x16xf32, #tpu.memory_space<vmem>>, vector<1x64x16xf32>
    %125 = vector.shape_cast %124 : vector<1x64x16xf32> to vector<64x16xf32>
    %cst_135 = arith.constant dense<0.000000e+00> : vector<8x16xf32>
    %126 = tpu.matmul %68, %125, %cst_135 {dimension_numbers = #tpu.dot_dimension_numbers<[1], [0], [0], [1], [0, 0, 1, 1], [], []>} : vector<8x64xf32>, vector<64x16xf32>, vector<8x16xf32> -> vector<8x16xf32>
    %c8_136 = arith.constant 8 : index
    %c0_137 = arith.constant 0 : index
    %c0_138 = arith.constant 0 : index
    %127 = vector.load %arg6[%c8_136, %c0_137, %c0_138] : memref<9x16x8xf32, #tpu.memory_space<vmem>>, vector<1x16x8xf32>
    %128 = vector.shape_cast %127 : vector<1x16x8xf32> to vector<16x8xf32>
    %cst_139 = arith.constant dense<0.000000e+00> : vector<16x16xf32>
    %129 = tpu.matmul %128, %126, %cst_139 {dimension_numbers = #tpu.dot_dimension_numbers<[1], [0], [0], [1], [0, 0, 1, 1], [], []>} : vector<16x8xf32>, vector<8x16xf32>, vector<16x16xf32> -> vector<16x16xf32>
    %130 = arith.addf %123, %129 : vector<16x16xf32>
    %c0_140 = arith.constant 0 : index
    %c0_141 = arith.constant 0 : index
    %131 = vector.load %arg7[%c0_140, %c0_141] : memref<16x1xf32, #tpu.memory_space<vmem>>, vector<16x1xf32>
    %132 = vector.broadcast %131 : vector<16x1xf32> to vector<16x16xf32>
    %133 = arith.addf %130, %132 : vector<16x16xf32>
    %cst_142 = arith.constant 0.000000e+00 : f32
    %134 = vector.broadcast %cst_142 : f32 to vector<16x16xf32>
    %135 = arith.maximumf %133, %134 : vector<16x16xf32>
    %c0_143 = arith.constant 0 : index
    %c0_144 = arith.constant 0 : index
    %c0_145 = arith.constant 0 : index
    %136 = vector.load %arg8[%c0_143, %c0_144, %c0_145] : memref<1x16x16xf32, #tpu.memory_space<vmem>>, vector<1x16x16xf32>
    %137 = vector.shape_cast %136 : vector<1x16x16xf32> to vector<16x16xf32>
    %138 = vector.shape_cast %135 : vector<16x16xf32> to vector<1x16x16xf32>
    tpu.vector_store %arg8[%c0_143, %c0_144, %c0_145], %138 {strides = array<i32>} : memref<1x16x16xf32, #tpu.memory_space<vmem>>, vector<1x16x16xf32>,
    return
  }
  func.func @transform_0(%arg0: i32) -> (i32, i32, i32) {
    %c0_i32 = arith.constant 0 : i32
    %c0_i32_0 = arith.constant 0 : i32
    %c0_i32_1 = arith.constant 0 : i32
    return %arg0, %c0_i32, %c0_i32_0 : i32, i32, i32
  }
  func.func @transform_1(%arg0: i32) -> (i32, i32, i32) {
    %c0_i32 = arith.constant 0 : i32
    %c0_i32_0 = arith.constant 0 : i32
    %c0_i32_1 = arith.constant 0 : i32
    %c0_i32_2 = arith.constant 0 : i32
    return %c0_i32, %c0_i32_0, %c0_i32_1 : i32, i32, i32
  }
  func.func @transform_2(%arg0: i32) -> (i32, i32, i32) {
    %c0_i32 = arith.constant 0 : i32
    %c0_i32_0 = arith.constant 0 : i32
    %c0_i32_1 = arith.constant 0 : i32
    %c0_i32_2 = arith.constant 0 : i32
    return %c0_i32, %c0_i32_0, %c0_i32_1 : i32, i32, i32
  }
  func.func @transform_3(%arg0: i32) -> (i32, i32) {
    %c0_i32 = arith.constant 0 : i32
    %c0_i32_0 = arith.constant 0 : i32
    %c0_i32_1 = arith.constant 0 : i32
    return %c0_i32, %c0_i32_0 : i32, i32
  }
  func.func @transform_4(%arg0: i32) -> (i32, i32, i32) {
    %c0_i32 = arith.constant 0 : i32
    %c0_i32_0 = arith.constant 0 : i32
    %c0_i32_1 = arith.constant 0 : i32
    %c0_i32_2 = arith.constant 0 : i32
    return %c0_i32, %c0_i32_0, %c0_i32_1 : i32, i32, i32
  }
  func.func @transform_5(%arg0: i32) -> (i32, i32, i32) {
    %c0_i32 = arith.constant 0 : i32
    %c0_i32_0 = arith.constant 0 : i32
    %c0_i32_1 = arith.constant 0 : i32
    %c0_i32_2 = arith.constant 0 : i32
    return %c0_i32, %c0_i32_0, %c0_i32_1 : i32, i32, i32
  }
  func.func @transform_6(%arg0: i32) -> (i32, i32) {
    %c0_i32 = arith.constant 0 : i32
    %c0_i32_0 = arith.constant 0 : i32
    %c0_i32_1 = arith.constant 0 : i32
    return %c0_i32, %c0_i32_0 : i32, i32
  }
  func.func @transform_7(%arg0: i32) -> (i32, i32, i32) {
    %c0_i32 = arith.constant 0 : i32
    %c0_i32_0 = arith.constant 0 : i32
    %c0_i32_1 = arith.constant 0 : i32
    return %arg0, %c0_i32, %c0_i32_0 : i32, i32, i32
  }
}

</mosaic_0001>

<llo_original>
// kernel: _forward_impl.3
$region0: #{_forward_impl.3}
  #allocation0 [shape = 'u32[]', space=smem, size = 0x4, offset = 0x4, fixed_abs, tag = 'smem constant byte address 0x4 - core index']
  #allocation1 [shape = 'u32[72,128]{1,0:T(1,128)}', space=vmem, size = 0x9000, scoped, tag = 'internal scratch']
  %s0 = inlined_call_operand.vmem [shape: f32[2,256], index: 0, kind: input, shape index: {}]
  %s1 = inlined_call_operand.hbm [shape: f32[256,32], index: 1, kind: input, shape index: {}]
  %s2 = inlined_call_operand.hbm [shape: f32[1,32], index: 2, kind: input, shape index: {}]
  %s3 = inlined_call_operand.hbm [shape: f32[32,16], index: 3, kind: input, shape index: {}]
  %s4 = inlined_call_operand.hbm [shape: f32[1,16], index: 4, kind: input, shape index: {}]
  %s5 = inlined_call_operand.hbm [shape: f32[2,16], index: 5, kind: output, shape index: {}]
  %s6 = sld [smem:[#allocation0]]
  $region46: #{_forward_impl.3} parent=0
    _
  %s8 = ssub.s32 1, %s6
  %s9 = scalar_select 0, %s8, %s6
  $region1: #{_forward_impl.3} parent=0
    #allocation2 [shape = 'u8[131072]{0}', space=vmem, size = 0x20000, scoped, tag = 'input window, operand 1, single buffered']
    #allocation3 [shape = 's32[1]{0}', space=sflag, size = 0x4, scoped, tag = 'scoped memory for _forward_impl.3']
    #allocation4 [shape = 's32[1]{0}', space=sflag, size = 0x4, scoped, tag = 'scoped memory for _forward_impl.3']
    #allocation5 [shape = 'u8[512]{0}', space=vmem, size = 0x400, scoped, tag = 'input window, operand 2, single buffered']
    #allocation6 [shape = 's32[1]{0}', space=sflag, size = 0x4, scoped, tag = 'scoped memory for _forward_impl.3']
    #allocation7 [shape = 'u8[16384]{0}', space=vmem, size = 0x4000, scoped, tag = 'input window, operand 3, single buffered']
    #allocation8 [shape = 'u8[512]{0}', space=vmem, size = 0x400, scoped, tag = 'input window, operand 4, single buffered']
    #allocation9 [shape = 's32[1]{0}', space=sflag, size = 0x4, scoped, tag = 'scoped memory for _forward_impl.3']
    #allocation10 [shape = 'u8[1024]{0}', space=vmem, size = 0x400, scoped, tag = 'output window, operand 0, single buffered']
    %10 = vsyncpa [#allocation3], 0
    %11 = vsyncpa [#allocation6], 0
    %12 = vsyncpa [#allocation9], 0
    %13 = vsyncpa [#allocation4], 0
    // Predicated region
    $region2: #{_forward_impl.3} parent=1 // pred_check
      _
    $region3: #{_forward_impl.3} parent=1 // pred_check_branch
      %15 = sbr.rel (0) target = $region5
    $region4: #{_forward_impl.3} parent=1 // pred_region
      _
    $region5: #{_forward_impl.3} parent=1 // pred_fallthru
      _
    // Predicated region
    $region6: #{_forward_impl.3} parent=1 // pred_check
      _
    $region7: #{_forward_impl.3} parent=1 // pred_check_branch
      %17 = sbr.rel (0) target = $region9
    $region8: #{_forward_impl.3} parent=1 // pred_region
      %19 = vsyncadd [#allocation3], 0
      %s20 = sshll.u32 %s1, 4
      %s21 = int_to_ptr.hbm [resolvable:$true] %s20
      %s22 = sshll.u32 [#allocation2], 4
      %s23 = int_to_ptr.vmem [resolvable:$true] %s22
      %28 = dma.hbm_to_vmem [thread:$0]  %s21, 4096, %s23, [#allocation3], 128, 128, 8
    $region9: #{_forward_impl.3} parent=1 // pred_fallthru
      _
    // Predicated region
    $region10: #{_forward_impl.3} parent=1 // pred_check
      _
    $region11: #{_forward_impl.3} parent=1 // pred_check_branch
      %30 = sbr.rel (0) target = $region13
    $region12: #{_forward_impl.3} parent=1 // pred_region
      %32 = vsyncadd [#allocation6], 0
      %s34 = sshll.u32 %s2, 4
      %s35 = int_to_ptr.hbm [resolvable:$true] %s34
      %s36 = sshll.u32 [#allocation5], 4
      %s37 = int_to_ptr.vmem [resolvable:$true] %s36
      %39 = dma.hbm_to_vmem [thread:$0]  %s35, 16, %s37, [#allocation6]
    $region13: #{_forward_impl.3} parent=1 // pred_fallthru
      _
    // Predicated region
    $region14: #{_forward_impl.3} parent=1 // pred_check
      _
    $region15: #{_forward_impl.3} parent=1 // pred_check_branch
      %41 = sbr.rel (0) target = $region17
    $region16: #{_forward_impl.3} parent=1 // pred_region
      %43 = vsyncadd [#allocation6], 0
      %s44 = sshll.u32 %s3, 4
      %s45 = int_to_ptr.hbm [resolvable:$true] %s44
      %s46 = sshll.u32 [#allocation7], 4
      %s47 = int_to_ptr.vmem [resolvable:$true] %s46
      %52 = dma.hbm_to_vmem [thread:$0]  %s45, 512, %s47, [#allocation6], 128, 128, 8
    $region17: #{_forward_impl.3} parent=1 // pred_fallthru
      _
    // Predicated region
    $region18: #{_forward_impl.3} parent=1 // pred_check
      _
    $region19: #{_forward_impl.3} parent=1 // pred_check_branch
      %54 = sbr.rel (0) target = $region21
    $region20: #{_forward_impl.3} parent=1 // pred_region
      %56 = vsyncadd [#allocation9], 0
      %s58 = sshll.u32 %s4, 4
      %s59 = int_to_ptr.hbm [resolvable:$true] %s58
      %s60 = sshll.u32 [#allocation8], 4
      %s61 = int_to_ptr.vmem [resolvable:$true] %s60
      %63 = dma.hbm_to_vmem [thread:$0]  %s59, 16, %s61, [#allocation9]
    $region21: #{_forward_impl.3} parent=1 // pred_fallthru
      _
    // Predicated region
    $region22: #{_forward_impl.3} parent=1 // pred_check
      _
    $region23: #{_forward_impl.3} parent=1 // pred_check_branch
      %65 = sbr.rel (0) target = $region25
    $region24: #{_forward_impl.3} parent=1 // pred_region
      %67 = dma.done [#allocation3], 4096
    $region25: #{_forward_impl.3} parent=1 // pred_fallthru
      _
    // Predicated region
    $region26: #{_forward_impl.3} parent=1 // pred_check
      _
    $region27: #{_forward_impl.3} parent=1 // pred_check_branch
      %69 = sbr.rel (0) target = $region29
    $region28: #{_forward_impl.3} parent=1 // pred_region
      %71 = dma.done [#allocation6], 16
    $region29: #{_forward_impl.3} parent=1 // pred_fallthru
      _
    // Predicated region
    $region30: #{_forward_impl.3} parent=1 // pred_check
      _
    $region31: #{_forward_impl.3} parent=1 // pred_check_branch
      %73 = sbr.rel (0) target = $region33
    $region32: #{_forward_impl.3} parent=1 // pred_region
      %75 = dma.done [#allocation6], 512
    $region33: #{_forward_impl.3} parent=1 // pred_fallthru
      _
    // Predicated region
    $region34: #{_forward_impl.3} parent=1 // pred_check
      _
    $region35: #{_forward_impl.3} parent=1 // pred_check_branch
      %77 = sbr.rel (0) target = $region37
    $region36: #{_forward_impl.3} parent=1 // pred_region
      %79 = dma.done [#allocation9], 16
    $region37: #{_forward_impl.3} parent=1 // pred_fallthru
      _
    %v80 = vld [vmem:[%s0] sm:$0xf]
    %v81 = vld [vmem:[#allocation2] sm:$0xff]
    %v82 = vld [vmem:[#allocation2 + $0x8] sm:$0xff]
    %v83 = vld [vmem:[#allocation2 + $0x10] sm:$0xff]
    %v84 = vld [vmem:[#allocation2 + $0x18] sm:$0xff]
    %v85 = vld [vmem:[#allocation2 + $0x20] sm:$0xff]
    %v86 = vld [vmem:[#allocation2 + $0x28] sm:$0xff]
    %v87 = vld [vmem:[#allocation2 + $0x30] sm:$0xff]
    %v88 = vld [vmem:[#allocation2 + $0x38] sm:$0xff]
    %v89 = vld [vmem:[#allocation2 + $0x40] sm:$0xff]
    %v90 = vld [vmem:[#allocation2 + $0x48] sm:$0xff]
    %v91 = vld [vmem:[#allocation2 + $0x50] sm:$0xff]
    %v92 = vld [vmem:[#allocation2 + $0x58] sm:$0xff]
    %v93 = vld [vmem:[#allocation2 + $0x60] sm:$0xff]
    %v94 = vld [vmem:[#allocation2 + $0x68] sm:$0xff]
    %v95 = vld [vmem:[#allocation2 + $0x70] sm:$0xff]
    %v96 = vld [vmem:[#allocation2 + $0x78] sm:$0xff]
    %v97 = vld [vmem:[#allocation2 + $0x80] sm:$0xff]
    %v98 = vld [vmem:[#allocation2 + $0x88] sm:$0xff]
    %v99 = vld [vmem:[#allocation2 + $0x90] sm:$0xff]
    %v100 = vld [vmem:[#allocation2 + $0x98] sm:$0xff]
    %v101 = vld [vmem:[#allocation2 + $0xa0] sm:$0xff]
    %v102 = vld [vmem:[#allocation2 + $0xa8] sm:$0xff]
    %v103 = vld [vmem:[#allocation2 + $0xb0] sm:$0xff]
    %v104 = vld [vmem:[#allocation2 + $0xb8] sm:$0xff]
    %v105 = vld [vmem:[#allocation2 + $0xc0] sm:$0xff]
    %v106 = vld [vmem:[#allocation2 + $0xc8] sm:$0xff]
    %v107 = vld [vmem:[#allocation2 + $0xd0] sm:$0xff]
    %v108 = vld [vmem:[#allocation2 + $0xd8] sm:$0xff]
    %v109 = vld [vmem:[#allocation2 + $0xe0] sm:$0xff]
    %v110 = vld [vmem:[#allocation2 + $0xe8] sm:$0xff]
    %v111 = vld [vmem:[#allocation2 + $0xf0] sm:$0xff]
    %v112 = vld [vmem:[#allocation2 + $0xf8] sm:$0xff]
    %v113 = vld [vmem:[#allocation5] sm:$0x1]
    %v115 = vperm.slane %v113, 0
    %118 = vst [vmem:[#allocation1] ss:$4 sm:$0xff] %v80
    %v119 = vld.sshfl [vmem:[#allocation1] sm:$0xff pattern:$0x73625140]
    %v120 = vld.sshfl [vmem:[#allocation1 + $0x8] sm:$0xff pattern:$0x73625140]
    %123 = vmatpush.msra.mxu0 %v96
    %124 = vmatpush.msra.mxu0 %v95
    %125 = vmatpush.msra.mxu0 %v94
    %126 = vmatpush.msra.mxu0 %v93
    %127 = vmatpush.msra.mxu0 %v92
    %128 = vmatpush.msra.mxu0 %v91
    %129 = vmatpush.msra.mxu0 %v90
    %130 = vmatpush.msra.mxu0 %v89
    %131 = vmatpush.msra.mxu0 %v88
    %132 = vmatpush.msra.mxu0 %v87
    %133 = vmatpush.msra.mxu0 %v86
    %134 = vmatpush.msra.mxu0 %v85
    %135 = vmatpush.msra.mxu0 %v84
    %136 = vmatpush.msra.mxu0 %v83
    %137 = vmatpush.msra.mxu0 %v82
    %138 = vmatpush.msra.mxu0 %v81
    %139 = vmatmul.f32.gmra.mxu0 %v119
    %v140 = vpop.f32.mrf.mxu0
    %v141 = vadd.f32 %v115, %v140
    %142 = vdwg.mxu0
    %143 = vmatpush.msra.mxu0 %v112
    %144 = vmatpush.msra.mxu0 %v111
    %145 = vmatpush.msra.mxu0 %v110
    %146 = vmatpush.msra.mxu0 %v109
    %147 = vmatpush.msra.mxu0 %v108
    %148 = vmatpush.msra.mxu0 %v107
    %149 = vmatpush.msra.mxu0 %v106
    %150 = vmatpush.msra.mxu0 %v105
    %151 = vmatpush.msra.mxu0 %v104
    %152 = vmatpush.msra.mxu0 %v103
    %153 = vmatpush.msra.mxu0 %v102
    %154 = vmatpush.msra.mxu0 %v101
    %155 = vmatpush.msra.mxu0 %v100
    %156 = vmatpush.msra.mxu0 %v99
    %157 = vmatpush.msra.mxu0 %v98
    %158 = vmatpush.msra.mxu0 %v97
    %159 = vmatmul.f32.gmra.mxu0 %v120
    %v160 = vpop.f32.mrf.mxu0
    %v161 = vadd.f32 %v141, %v160
    %162 = vdwg.mxu0
    %v163 = vmax.f32 %v161, 0.0
    %v164 = vld [vmem:[#allocation7] sm:$0xff]
    %v165 = vld [vmem:[#allocation7 + $0x8] sm:$0xff]
    %v166 = vld [vmem:[#allocation7 + $0x10] sm:$0xff]
    %v167 = vld [vmem:[#allocation7 + $0x18] sm:$0xff]
    %v168 = vld [vmem:[#allocation8] sm:$0x1]
    %v170 = vperm.slane %v168, 0
    %vm172 = vcmask 261120
    %v174 = vsel %vm172, %v163, 0
    %176 = vmatpush.msra.mxu0 0.0
    %177 = vmatpush.msra.mxu0 0.0
    %178 = vmatpush.msra.mxu0 0.0
    %179 = vmatpush.msra.mxu0 0.0
    %180 = vmatpush.msra.mxu0 0.0
    %181 = vmatpush.msra.mxu0 0.0
    %182 = vmatpush.msra.mxu0 0.0
    %183 = vmatpush.msra.mxu0 0.0
    %184 = vmatpush.msra.mxu0 0.0
    %185 = vmatpush.msra.mxu0 0.0
    %186 = vmatpush.msra.mxu0 0.0
    %187 = vmatpush.msra.mxu0 0.0
    %188 = vmatpush.msra.mxu0 %v167
    %189 = vmatpush.msra.mxu0 %v166
    %190 = vmatpush.msra.mxu0 %v165
    %191 = vmatpush.msra.mxu0 %v164
    %192 = vmatmul.f32.gmra.mxu0 %v174
    %v193 = vpop.f32.mrf.mxu0
    %v194 = vadd.f32 %v170, %v193
    %195 = vdwg.mxu0
    %vm196 = vcmask 123904
    %197 = vst.msk [vmem:[#allocation10] sm:$0x3] %vm196, %v194
    // Predicated region
    $region38: #{_forward_impl.3} parent=1 // pred_check
      _
    $region39: #{_forward_impl.3} parent=1 // pred_check_branch
      %199 = sbr.rel (0) target = $region41
    $region40: #{_forward_impl.3} parent=1 // pred_region
      %201 = vsyncadd [#allocation4], 0
      %s203 = sshll.u32 [#allocation10], 4
      %s204 = int_to_ptr.vmem [resolvable:$true] %s203
      %s205 = sshll.u32 %s5, 4
      %s206 = int_to_ptr.hbm [resolvable:$true] %s205
      %208 = dma.vmem_to_hbm [thread:$0]  %s204, 32, %s206, [#allocation4]
    $region41: #{_forward_impl.3} parent=1 // pred_fallthru
      _
    // Predicated region
    $region42: #{_forward_impl.3} parent=1 // pred_check
      _
    $region43: #{_forward_impl.3} parent=1 // pred_check_branch
      %210 = sbr.rel (0) target = $region45
    $region44: #{_forward_impl.3} parent=1 // pred_region
      %212 = dma.done [#allocation4], 32
    $region45: #{_forward_impl.3} parent=1 // pred_fallthru
      _
    %213 = vsyncpa [#allocation3], 1
    %214 = vsyncpa [#allocation6], 1
    %215 = vsyncpa [#allocation9], 1
    %216 = vsyncpa [#allocation4], 1

// kernel: _forward_impl.2
$region0: #{_forward_impl.2}
  #allocation0 [shape = 'u32[]', space=smem, size = 0x4, offset = 0x4, fixed_abs, tag = 'smem constant byte address 0x4 - core index']
  #allocation1 [shape = 'u32[72,128]{1,0:T(1,128)}', space=vmem, size = 0x9000, scoped, tag = 'internal scratch']
  %s0 = inlined_call_operand.vmem [shape: f32[2,4,256], index: 0, kind: input, shape index: {}]
  %s1 = inlined_call_operand.hbm [shape: f32[9,256,64], index: 1, kind: input, shape index: {}]
  %s2 = inlined_call_operand.hbm [shape: f32[9,8,4], index: 2, kind: input, shape index: {}]
  %s3 = inlined_call_operand.hbm [shape: f32[8,1], index: 3, kind: input, shape index: {}]
  %s4 = inlined_call_operand.hbm [shape: f32[9,64,16], index: 4, kind: input, shape index: {}]
  %s5 = inlined_call_operand.hbm [shape: f32[9,16,8], index: 5, kind: input, shape index: {}]
  %s6 = inlined_call_operand.hbm [shape: f32[16,1], index: 6, kind: input, shape index: {}]
  %s7 = inlined_call_operand.vmem [shape: f32[2,16,16], index: 7, kind: output, shape index: {}]
  %s8 = sld [smem:[#allocation0]]
  $region85: #{_forward_impl.2} parent=0
    _
  %s10 = ssub.s32 1, %s8
  %s11 = scalar_select 0, %s10, %s8
  $region1: #{_forward_impl.2} parent=0
    #allocation2 [shape = 'u8[1179648]{0}', space=vmem, size = 0x120000, scoped, tag = 'input window, operand 1, single buffered']
    #allocation3 [shape = 's32[2]{0}', space=sflag, size = 0x8, scoped, tag = 'scoped memory for _forward_impl.2']
    #allocation4 [shape = 'u8[36864]{0}', space=vmem, size = 0x9000, scoped, tag = 'input window, operand 2, single buffered']
    #allocation5 [shape = 's32[1]{0}', space=sflag, size = 0x4, scoped, tag = 'scoped memory for _forward_impl.2']
    #allocation6 [shape = 'u8[4096]{0}', space=vmem, size = 0x1000, scoped, tag = 'input window, operand 3, single buffered']
    #allocation7 [shape = 'u8[294912]{0}', space=vmem, size = 0x48000, scoped, tag = 'input window, operand 4, single buffered']
    #allocation8 [shape = 's32[1]{0}', space=sflag, size = 0x4, scoped, tag = 'scoped memory for _forward_impl.2']
    #allocation9 [shape = 'u8[73728]{0}', space=vmem, size = 0x12000, scoped, tag = 'input window, operand 5, single buffered']
    #allocation10 [shape = 'u8[8192]{0}', space=vmem, size = 0x2000, scoped, tag = 'input window, operand 6, single buffered']
    #allocation11 [shape = 's32[1]{0}', space=sflag, size = 0x4, scoped, tag = 'scoped memory for _forward_impl.2']
    %12 = vsyncpa [#allocation3], 0
    %13 = vsyncpa [#allocation5], 0
    %14 = vsyncpa [#allocation8], 0
    %15 = vsyncpa [#allocation11], 0
    loop: start=0, step=1, limit=4
    $region2: #{_forward_impl.2} parent=1 // loop_pre_header
      _
    $region3: #{_forward_impl.2} parent=1 // loop_header
      %s17 = sphi 0, %s21
      %p18 = scmp.ge.s32.totalorder %s17, 4
      %s27 = sphi 0, %s29
      %s30 = sphi 0, %s27
      %s31 = sphi 0, %s30
      %s47 = sphi 0, %s31
      %s51 = sphi 0, %s51
      %s53 = sphi 0, %s51
      %s54 = sphi 0, %s53
      %s68 = sphi 0, %s54
      %s72 = sphi 0, %s72
      %s74 = sphi 0, %s72
      %s75 = sphi 0, %s74
      %s89 = sphi 0, %s75
      %s93 = sphi 0, %s93
      %s95 = sphi 0, %s93
      %s96 = sphi 0, %s95
      %s110 = sphi 0, %s96
      %s114 = sphi 0, %s114
      %s116 = sphi 0, %s114
      %s117 = sphi 0, %s116
      %s131 = sphi 0, %s117
      %s135 = sphi 0, %s135
      %s137 = sphi 0, %s135
      %s138 = sphi 0, %s137
      %s152 = sphi 0, %s138
      %s156 = sphi 0, %s156
      %s158 = sphi 0, %s156
      %s159 = sphi 0, %s158
      %s173 = sphi 0, %s159
      %s179 = sphi 0, %s181
      %s182 = sphi 0, %s179
      %s183 = sphi 0, %s182
      %s199 = sphi 0, %s183
    $region4: #{_forward_impl.2} parent=1 // loop_header_branch
      %20 = sbr.rel (%p18) target = $region8
    $region5: #{_forward_impl.2} parent=1 // loop_body
      %s22 = ssub.s32 %s17, 1
      %s23 = ssub.s32 %s17, 2
      %s24 = sadd.s32 %s17, 1
      %s25 = ssub.s32 %s17, %s24
      %p26 = scmp.eq.s32.totalorder %s25, 0
      %s28 = sadd.s32 %s27, 1
      %s29 = scalar_select %p26, %s27, %s28
      %p32 = pneg %p26
      %p33 = scmp.eq.s32.totalorder %s17, 1
      %p34 = por %p32, %p33
      %p35 = scmp.ne.s32.totalorder %s27, %s30
      %p36 = scmp.eq.s32.totalorder %s17, 0
      %p37 = por %p35, %p36
      %p38 = scmp.ne.s32.totalorder %s27, %s30
      %p39 = scmp.eq.s32.totalorder %s22, 1
      %p40 = por %p38, %p39
      %p41 = scmp.ne.s32.totalorder %s30, %s31
      %p42 = scmp.eq.s32.totalorder %s22, 0
      %p43 = por %p41, %p42
      %p44 = scmp.ne.s32.totalorder %s30, %s31
      %p45 = scmp.eq.s32.totalorder %s23, 1
      %p46 = por %p44, %p45
      %p48 = scmp.ne.s32.totalorder %s31, %s47
      %p49 = scmp.eq.s32.totalorder %s23, 0
      %p50 = por %p48, %p49
      %s52 = sadd.s32 %s51, 1
      %p55 = scmp.eq.s32.totalorder %s17, 1
      %p56 = scmp.ne.s32.totalorder %s51, %s53
      %p57 = scmp.eq.s32.totalorder %s17, 0
      %p58 = por %p56, %p57
      %p59 = scmp.ne.s32.totalorder %s51, %s53
      %p60 = scmp.eq.s32.totalorder %s22, 1
      %p61 = por %p59, %p60
      %p62 = scmp.ne.s32.totalorder %s53, %s54
      %p63 = scmp.eq.s32.totalorder %s22, 0
      %p64 = por %p62, %p63
      %p65 = scmp.ne.s32.totalorder %s53, %s54
      %p66 = scmp.eq.s32.totalorder %s23, 1
      %p67 = por %p65, %p66
      %p69 = scmp.ne.s32.totalorder %s54, %s68
      %p70 = scmp.eq.s32.totalorder %s23, 0
      %p71 = por %p69, %p70
      %s73 = sadd.s32 %s72, 1
      %p76 = scmp.eq.s32.totalorder %s17, 1
      %p77 = scmp.ne.s32.totalorder %s72, %s74
      %p78 = scmp.eq.s32.totalorder %s17, 0
      %p79 = por %p77, %p78
      %p80 = scmp.ne.s32.totalorder %s72, %s74
      %p81 = scmp.eq.s32.totalorder %s22, 1
      %p82 = por %p80, %p81
      %p83 = scmp.ne.s32.totalorder %s74, %s75
      %p84 = scmp.eq.s32.totalorder %s22, 0
      %p85 = por %p83, %p84
      %p86 = scmp.ne.s32.totalorder %s74, %s75
      %p87 = scmp.eq.s32.totalorder %s23, 1
      %p88 = por %p86, %p87
      %p90 = scmp.ne.s32.totalorder %s75, %s89
      %p91 = scmp.eq.s32.totalorder %s23, 0
      %p92 = por %p90, %p91
      %s94 = sadd.s32 %s93, 1
      %p97 = scmp.eq.s32.totalorder %s17, 1
      %p98 = scmp.ne.s32.totalorder %s93, %s95
      %p99 = scmp.eq.s32.totalorder %s17, 0
      %p100 = por %p98, %p99
      %p101 = scmp.ne.s32.totalorder %s93, %s95
      %p102 = scmp.eq.s32.totalorder %s22, 1
      %p103 = por %p101, %p102
      %p104 = scmp.ne.s32.totalorder %s95, %s96
      %p105 = scmp.eq.s32.totalorder %s22, 0
      %p106 = por %p104, %p105
      %p107 = scmp.ne.s32.totalorder %s95, %s96
      %p108 = scmp.eq.s32.totalorder %s23, 1
      %p109 = por %p107, %p108
      %p111 = scmp.ne.s32.totalorder %s96, %s110
      %p112 = scmp.eq.s32.totalorder %s23, 0
      %p113 = por %p111, %p112
      %s115 = sadd.s32 %s114, 1
      %p118 = scmp.eq.s32.totalorder %s17, 1
      %p119 = scmp.ne.s32.totalorder %s114, %s116
      %p120 = scmp.eq.s32.totalorder %s17, 0
      %p121 = por %p119, %p120
      %p122 = scmp.ne.s32.totalorder %s114, %s116
      %p123 = scmp.eq.s32.totalorder %s22, 1
      %p124 = por %p122, %p123
      %p125 = scmp.ne.s32.totalorder %s116, %s117
      %p126 = scmp.eq.s32.totalorder %s22, 0
      %p127 = por %p125, %p126
      %p128 = scmp.ne.s32.totalorder %s116, %s117
      %p129 = scmp.eq.s32.totalorder %s23, 1
      %p130 = por %p128, %p129
      %p132 = scmp.ne.s32.totalorder %s117, %s131
      %p133 = scmp.eq.s32.totalorder %s23, 0
      %p134 = por %p132, %p133
      %s136 = sadd.s32 %s135, 1
      %p139 = scmp.eq.s32.totalorder %s17, 1
      %p140 = scmp.ne.s32.totalorder %s135, %s137
      %p141 = scmp.eq.s32.totalorder %s17, 0
      %p142 = por %p140, %p141
      %p143 = scmp.ne.s32.totalorder %s135, %s137
      %p144 = scmp.eq.s32.totalorder %s22, 1
      %p145 = por %p143, %p144
      %p146 = scmp.ne.s32.totalorder %s137, %s138
      %p147 = scmp.eq.s32.totalorder %s22, 0
      %p148 = por %p146, %p147
      %p149 = scmp.ne.s32.totalorder %s137, %s138
      %p150 = scmp.eq.s32.totalorder %s23, 1
      %p151 = por %p149, %p150
      %p153 = scmp.ne.s32.totalorder %s138, %s152
      %p154 = scmp.eq.s32.totalorder %s23, 0
      %p155 = por %p153, %p154
      %s157 = sadd.s32 %s156, 1
      %p160 = scmp.eq.s32.totalorder %s17, 1
      %p161 = scmp.ne.s32.totalorder %s156, %s158
      %p162 = scmp.eq.s32.totalorder %s17, 0
      %p163 = por %p161, %p162
      %p164 = scmp.ne.s32.totalorder %s156, %s158
      %p165 = scmp.eq.s32.totalorder %s22, 1
      %p166 = por %p164, %p165
      %p167 = scmp.ne.s32.totalorder %s158, %s159
      %p168 = scmp.eq.s32.totalorder %s22, 0
      %p169 = por %p167, %p168
      %p170 = scmp.ne.s32.totalorder %s158, %s159
      %p171 = scmp.eq.s32.totalorder %s23, 1
      %p172 = por %p170, %p171
      %p174 = scmp.ne.s32.totalorder %s159, %s173
      %p175 = scmp.eq.s32.totalorder %s23, 0
      %p176 = por %p174, %p175
      %s177 = ssub.s32 %s17, %s24
      %p178 = scmp.eq.s32.totalorder %s177, 0
      %s180 = sadd.s32 %s179, 1
      %s181 = scalar_select %p178, %s179, %s180
      %p184 = pneg %p178
      %p185 = scmp.eq.s32.totalorder %s17, 1
      %p186 = por %p184, %p185
      %p187 = scmp.ne.s32.totalorder %s179, %s182
      %p188 = scmp.eq.s32.totalorder %s17, 0
      %p189 = por %p187, %p188
      %p190 = scmp.ne.s32.totalorder %s179, %s182
      %p191 = scmp.eq.s32.totalorder %s22, 1
      %p192 = por %p190, %p191
      %p193 = scmp.ne.s32.totalorder %s182, %s183
      %p194 = scmp.eq.s32.totalorder %s22, 0
      %p195 = por %p193, %p194
      %p196 = scmp.ne.s32.totalorder %s182, %s183
      %p197 = scmp.eq.s32.totalorder %s23, 1
      %p198 = por %p196, %p197
      %p200 = scmp.ne.s32.totalorder %s183, %s199
      %p201 = scmp.eq.s32.totalorder %s23, 0
      %p202 = por %p200, %p201
      %p203 = scmp.le.s32.totalorder 1, %s17
      %p204 = scmp.lt.s32.totalorder %s17, 3
      %p205 = pnand %p203, %p204
      %p206 = pneg %p205
      // Predicated region
      $region9: #{_forward_impl.2} parent=5 // pred_check
        _
      $region10: #{_forward_impl.2} parent=5 // pred_check_branch
        %208 = sbr.rel (%p205) target = $region12
      $region11: #{_forward_impl.2} parent=5 // pred_region
        %s209 = ssub.s32 %s17, 1
        // Predicated region
        $region13: #{_forward_impl.2} parent=11 // pred_check
          %p210 = pneg %p64
        $region14: #{_forward_impl.2} parent=11 // pred_check_branch
          %212 = sbr.rel (%p210) target = $region16
        $region15: #{_forward_impl.2} parent=11 // pred_region
          %214 = vsyncadd [#allocation3], 0
          %s215 = sshll.u32 %s1, 4
          %s216 = int_to_ptr.hbm [resolvable:$true] %s215
          %s217 = sshll.u32 [#allocation2], 4
          %s218 = int_to_ptr.vmem [resolvable:$true] %s217
          %223 = dma.hbm_to_vmem [thread:$0]  %s216, 36864, %s218, [#allocation3], 128, 128, 8
        $region16: #{_forward_impl.2} parent=11 // pred_fallthru
          _
        // Predicated region
        $region17: #{_forward_impl.2} parent=11 // pred_check
          %p224 = pneg %p85
        $region18: #{_forward_impl.2} parent=11 // pred_check_branch
          %226 = sbr.rel (%p224) target = $region20
        $region19: #{_forward_impl.2} parent=11 // pred_region
          %228 = vsyncadd [#allocation5], 0
          %s229 = sshll.u32 %s2, 4
          %s230 = int_to_ptr.hbm [resolvable:$true] %s229
          %s231 = sshll.u32 [#allocation4], 4
          %s232 = int_to_ptr.vmem [resolvable:$true] %s231
          %237 = dma.hbm_to_vmem [thread:$0]  %s230, 1152, %s232, [#allocation5], 128, 128, 8
        $region20: #{_forward_impl.2} parent=11 // pred_fallthru
          _
        // Predicated region
        $region21: #{_forward_impl.2} parent=11 // pred_check
          %p238 = pneg %p106
        $region22: #{_forward_impl.2} parent=11 // pred_check_branch
          %240 = sbr.rel (%p238) target = $region24
        $region23: #{_forward_impl.2} parent=11 // pred_region
          %242 = vsyncadd [#allocation5], 0
          %s244 = sshll.u32 %s3, 4
          %s245 = int_to_ptr.hbm [resolvable:$true] %s244
          %s246 = sshll.u32 [#allocation6], 4
          %s247 = int_to_ptr.vmem [resolvable:$true] %s246
          %249 = dma.hbm_to_vmem [thread:$0]  %s245, 128, %s247, [#allocation5]
        $region24: #{_forward_impl.2} parent=11 // pred_fallthru
          _
        // Predicated region
        $region25: #{_forward_impl.2} parent=11 // pred_check
          %p250 = pneg %p127
        $region26: #{_forward_impl.2} parent=11 // pred_check_branch
          %252 = sbr.rel (%p250) target = $region28
        $region27: #{_forward_impl.2} parent=11 // pred_region
          %254 = vsyncadd [#allocation8], 0
          %s255 = sshll.u32 %s4, 4
          %s256 = int_to_ptr.hbm [resolvable:$true] %s255
          %s257 = sshll.u32 [#allocation7], 4
          %s258 = int_to_ptr.vmem [resolvable:$true] %s257
          %263 = dma.hbm_to_vmem [thread:$0]  %s256, 9216, %s258, [#allocation8], 128, 128, 8
        $region28: #{_forward_impl.2} parent=11 // pred_fallthru
          _
        // Predicated region
        $region29: #{_forward_impl.2} parent=11 // pred_check
          %p264 = pneg %p148
        $region30: #{_forward_impl.2} parent=11 // pred_check_branch
          %266 = sbr.rel (%p264) target = $region32
        $region31: #{_forward_impl.2} parent=11 // pred_region
          %268 = vsyncadd [#allocation8], 0
          %s269 = sshll.u32 %s5, 4
          %s270 = int_to_ptr.hbm [resolvable:$true] %s269
          %s271 = sshll.u32 [#allocation9], 4
          %s272 = int_to_ptr.vmem [resolvable:$true] %s271
          %277 = dma.hbm_to_vmem [thread:$0]  %s270, 2304, %s272, [#allocation8], 128, 128, 8
        $region32: #{_forward_impl.2} parent=11 // pred_fallthru
          _
        // Predicated region
        $region33: #{_forward_impl.2} parent=11 // pred_check
          %p278 = pneg %p169
        $region34: #{_forward_impl.2} parent=11 // pred_check_branch
          %280 = sbr.rel (%p278) target = $region36
        $region35: #{_forward_impl.2} parent=11 // pred_region
          %282 = vsyncadd [#allocation11], 0
          %s283 = sshll.u32 %s6, 4
          %s284 = int_to_ptr.hbm [resolvable:$true] %s283
          %s285 = sshll.u32 [#allocation10], 4
          %s286 = int_to_ptr.vmem [resolvable:$true] %s285
          %291 = dma.hbm_to_vmem [thread:$0]  %s284, 256, %s286, [#allocation11], 128, 128, 8
        $region36: #{_forward_impl.2} parent=11 // pred_fallthru
          _
      $region12: #{_forward_impl.2} parent=5 // pred_fallthru
        _
      %p292 = scmp.lt.s32.totalorder %s17, 2
      // Predicated region
      $region37: #{_forward_impl.2} parent=5 // pred_check
        %p293 = pneg %p292
      $region38: #{_forward_impl.2} parent=5 // pred_check_branch
        %295 = sbr.rel (%p293) target = $region40
      $region39: #{_forward_impl.2} parent=5 // pred_region
        // Predicated region
        $region41: #{_forward_impl.2} parent=39 // pred_check
          %p296 = pneg %p37
        $region42: #{_forward_impl.2} parent=39 // pred_check_branch
          %298 = sbr.rel (%p296) target = $region44
        $region43: #{_forward_impl.2} parent=39 // pred_region
          %p299 = scmp.lt.s32.totalorder %s17, 1
          %s300 = scalar_select %p299, %s17, 1
          %s301 = smul.addr %s300, 2
          %s302 = smul.addr %s301, 4
          %s303 = scalar_lea.vmem %s0, %s302
        $region44: #{_forward_impl.2} parent=39 // pred_fallthru
          _
      $region40: #{_forward_impl.2} parent=5 // pred_fallthru
        _
      %p304 = scmp.le.s32.totalorder 1, %s17
      %p305 = scmp.lt.s32.totalorder %s17, 3
      %p306 = pnand %p304, %p305
      %p307 = pneg %p306
      // Predicated region
      $region45: #{_forward_impl.2} parent=5 // pred_check
        _
      $region46: #{_forward_impl.2} parent=5 // pred_check_branch
        %309 = sbr.rel (%p306) target = $region48
      $region47: #{_forward_impl.2} parent=5 // pred_region
        %s310 = ssub.s32 %s17, 1
        // Predicated region
        $region49: #{_forward_impl.2} parent=47 // pred_check
          %p311 = pneg %p64
        $region50: #{_forward_impl.2} parent=47 // pred_check_branch
          %313 = sbr.rel (%p311) target = $region52
        $region51: #{_forward_impl.2} parent=47 // pred_region
          %315 = dma.done [#allocation3], 36864
        $region52: #{_forward_impl.2} parent=47 // pred_fallthru
          _
        // Predicated region
        $region53: #{_forward_impl.2} parent=47 // pred_check
          %p316 = pneg %p85
        $region54: #{_forward_impl.2} parent=47 // pred_check_branch
          %318 = sbr.rel (%p316) target = $region56
        $region55: #{_forward_impl.2} parent=47 // pred_region
          %320 = dma.done [#allocation5], 1152
        $region56: #{_forward_impl.2} parent=47 // pred_fallthru
          _
        // Predicated region
        $region57: #{_forward_impl.2} parent=47 // pred_check
          %p321 = pneg %p106
        $region58: #{_forward_impl.2} parent=47 // pred_check_branch
          %323 = sbr.rel (%p321) target = $region60
        $region59: #{_forward_impl.2} parent=47 // pred_region
          %325 = dma.done [#allocation5], 128
        $region60: #{_forward_impl.2} parent=47 // pred_fallthru
          _
        // Predicated region
        $region61: #{_forward_impl.2} parent=47 // pred_check
          %p326 = pneg %p127
        $region62: #{_forward_impl.2} parent=47 // pred_check_branch
          %328 = sbr.rel (%p326) target = $region64
        $region63: #{_forward_impl.2} parent=47 // pred_region
          %330 = dma.done [#allocation8], 9216
        $region64: #{_forward_impl.2} parent=47 // pred_fallthru
          _
        // Predicated region
        $region65: #{_forward_impl.2} parent=47 // pred_check
          %p331 = pneg %p148
        $region66: #{_forward_impl.2} parent=47 // pred_check_branch
          %333 = sbr.rel (%p331) target = $region68
        $region67: #{_forward_impl.2} parent=47 // pred_region
          %335 = dma.done [#allocation8], 2304
        $region68: #{_forward_impl.2} parent=47 // pred_fallthru
          _
        // Predicated region
        $region69: #{_forward_impl.2} parent=47 // pred_check
          %p336 = pneg %p169
        $region70: #{_forward_impl.2} parent=47 // pred_check_branch
          %338 = sbr.rel (%p336) target = $region72
        $region71: #{_forward_impl.2} parent=47 // pred_region
          %340 = dma.done [#allocation11], 256
        $region72: #{_forward_impl.2} parent=47 // pred_fallthru
          _
        %p341 = scmp.lt.s32.totalorder %s22, 1
        %s342 = scalar_select %p341, %s22, 1
        %s343 = smul.addr %s342, 2
        %s344 = smul.addr %s343, 4
        %s345 = scalar_lea.vmem %s0, %s344
        %p346 = pneg %p43
        %p347 = pneg %p40
        %p348 = pneg %p64
        %p349 = pneg %p61
        %p350 = pneg %p85
        %p351 = pneg %p82
        %p352 = pneg %p106
        %p353 = pneg %p103
        %p354 = pneg %p127
        %p355 = pneg %p124
        %p356 = pneg %p148
        %p357 = pneg %p145
        %p358 = pneg %p169
        %p359 = pneg %p166
        %p360 = pneg %p195
        %p361 = pneg %p192
        %p362 = scmp.lt.s32.totalorder %s22, 1
        %s363 = scalar_select %p362, %s22, 1
        %s364 = smul.addr %s363, 2
        %s365 = smul.addr %s364, 8
        %s366 = scalar_lea.vmem %s7, %s365
        %p367 = scmp.lt.s32.totalorder %s22, 1
        %s368 = scalar_select %p367, %s22, 1
        %s369 = smul.addr %s368, 2
        %s370 = smul.addr %s369, 4
        %s371 = scalar_lea.vmem %s0, %s370
        %p372 = scmp.lt.s32.totalorder %s22, 1
        %s373 = scalar_select %p372, %s22, 1
        %s374 = smul.addr %s373, 2
        %s375 = smul.addr %s374, 8
        %s376 = scalar_lea.vmem %s7, %s375
        %v377 = vld [vmem:[%s371] sm:$0xff]
        %v378 = vld [vmem:[#allocation2] sm:$0xff]
        %v379 = vld [vmem:[#allocation2 + $0x8] sm:$0xff]
        %v380 = vld [vmem:[#allocation2 + $0x10] sm:$0xff]
        %v381 = vld [vmem:[#allocation2 + $0x18] sm:$0xff]
        %v382 = vld [vmem:[#allocation2 + $0x20] sm:$0xff]
        %v383 = vld [vmem:[#allocation2 + $0x28] sm:$0xff]
        %v384 = vld [vmem:[#allocation2 + $0x30] sm:$0xff]
        %v385 = vld [vmem:[#allocation2 + $0x38] sm:$0xff]
        %v386 = vld [vmem:[#allocation2 + $0x40] sm:$0xff]
        %v387 = vld [vmem:[#allocation2 + $0x48] sm:$0xff]
        %v388 = vld [vmem:[#allocation2 + $0x50] sm:$0xff]
        %v389 = vld [vmem:[#allocation2 + $0x58] sm:$0xff]
        %v390 = vld [vmem:[#allocation2 + $0x60] sm:$0xff]
        %v391 = vld [vmem:[#allocation2 + $0x68] sm:$0xff]
        %v392 = vld [vmem:[#allocation2 + $0x70] sm:$0xff]
        %v393 = vld [vmem:[#allocation2 + $0x78] sm:$0xff]
        %v394 = vld [vmem:[#allocation2 + $0x80] sm:$0xff]
        %v395 = vld [vmem:[#allocation2 + $0x88] sm:$0xff]
        %v396 = vld [vmem:[#allocation2 + $0x90] sm:$0xff]
        %v397 = vld [vmem:[#allocation2 + $0x98] sm:$0xff]
        %v398 = vld [vmem:[#allocation2 + $0xa0] sm:$0xff]
        %v399 = vld [vmem:[#allocation2 + $0xa8] sm:$0xff]
        %v400 = vld [vmem:[#allocation2 + $0xb0] sm:$0xff]
        %v401 = vld [vmem:[#allocation2 + $0xb8] sm:$0xff]
        %v402 = vld [vmem:[#allocation2 + $0xc0] sm:$0xff]
        %v403 = vld [vmem:[#allocation2 + $0xc8] sm:$0xff]
        %v404 = vld [vmem:[#allocation2 + $0xd0] sm:$0xff]
        %v405 = vld [vmem:[#allocation2 + $0xd8] sm:$0xff]
        %v406 = vld [vmem:[#allocation2 + $0xe0] sm:$0xff]
        %v407 = vld [vmem:[#allocation2 + $0xe8] sm:$0xff]
        %v408 = vld [vmem:[#allocation2 + $0xf0] sm:$0xff]
        %v409 = vld [vmem:[#allocation2 + $0xf8] sm:$0xff]
        %411 = vst [vmem:[#allocation1] ss:$2 sm:$0xff] %v377
        %v412 = vld.sshfl [vmem:[#allocation1] sm:$0xff pattern:$0x75316420]
        %v413 = vld.sshfl [vmem:[#allocation1 + $0x8] sm:$0xff pattern:$0x75316420]
        %416 = vmatpush.msra.mxu0 %v393
        %417 = vmatpush.msra.mxu0 %v392
        %418 = vmatpush.msra.mxu0 %v391
        %419 = vmatpush.msra.mxu0 %v390
        %420 = vmatpush.msra.mxu0 %v389
        %421 = vmatpush.msra.mxu0 %v388
        %422 = vmatpush.msra.mxu0 %v387
        %423 = vmatpush.msra.mxu0 %v386
        %424 = vmatpush.msra.mxu0 %v385
        %425 = vmatpush.msra.mxu0 %v384
        %426 = vmatpush.msra.mxu0 %v383
        %427 = vmatpush.msra.mxu0 %v382
        %428 = vmatpush.msra.mxu0 %v381
        %429 = vmatpush.msra.mxu0 %v380
        %430 = vmatpush.msra.mxu0 %v379
        %431 = vmatpush.msra.mxu0 %v378
        %432 = vmatmul.f32.gmra.mxu0 %v412
        %v433 = vpop.f32.mrf.mxu0
        %v434 = vadd.f32 0.0, %v433
        %435 = vdwg.mxu0
        %436 = vmatpush.msra.mxu0 %v409
        %437 = vmatpush.msra.mxu0 %v408
        %438 = vmatpush.msra.mxu0 %v407
        %439 = vmatpush.msra.mxu0 %v406
        %440 = vmatpush.msra.mxu0 %v405
        %441 = vmatpush.msra.mxu0 %v404
        %442 = vmatpush.msra.mxu0 %v403
        %443 = vmatpush.msra.mxu0 %v402
        %444 = vmatpush.msra.mxu0 %v401
        %445 = vmatpush.msra.mxu0 %v400
        %446 = vmatpush.msra.mxu0 %v399
        %447 = vmatpush.msra.mxu0 %v398
        %448 = vmatpush.msra.mxu0 %v397
        %449 = vmatpush.msra.mxu0 %v396
        %450 = vmatpush.msra.mxu0 %v395
        %451 = vmatpush.msra.mxu0 %v394
        %452 = vmatmul.f32.gmra.mxu0 %v413
        %v453 = vpop.f32.mrf.mxu0
        %v454 = vadd.f32 %v434, %v453
        %455 = vdwg.mxu0
        %v456 = vld [vmem:[#allocation4] sm:$0xff]
        %s457 = scalar_lea.vmem [#allocation2], 256
        %v458 = vld [vmem:[%s457] sm:$0xff]
        %v459 = vld [vmem:[%s457 + $0x8] sm:$0xff]
        %v460 = vld [vmem:[%s457 + $0x10] sm:$0xff]
        %v461 = vld [vmem:[%s457 + $0x18] sm:$0xff]
        %v462 = vld [vmem:[%s457 + $0x20] sm:$0xff]
        %v463 = vld [vmem:[%s457 + $0x28] sm:$0xff]
        %v464 = vld [vmem:[%s457 + $0x30] sm:$0xff]
        %v465 = vld [vmem:[%s457 + $0x38] sm:$0xff]
        %v466 = vld [vmem:[%s457 + $0x40] sm:$0xff]
        %v467 = vld [vmem:[%s457 + $0x48] sm:$0xff]
        %v468 = vld [vmem:[%s457 + $0x50] sm:$0xff]
        %v469 = vld [vmem:[%s457 + $0x58] sm:$0xff]
        %v470 = vld [vmem:[%s457 + $0x60] sm:$0xff]
        %v471 = vld [vmem:[%s457 + $0x68] sm:$0xff]
        %v472 = vld [vmem:[%s457 + $0x70] sm:$0xff]
        %v473 = vld [vmem:[%s457 + $0x78] sm:$0xff]
        %v474 = vld [vmem:[%s457 + $0x80] sm:$0xff]
        %v475 = vld [vmem:[%s457 + $0x88] sm:$0xff]
        %v476 = vld [vmem:[%s457 + $0x90] sm:$0xff]
        %v477 = vld [vmem:[%s457 + $0x98] sm:$0xff]
        %v478 = vld [vmem:[%s457 + $0xa0] sm:$0xff]
        %v479 = vld [vmem:[%s457 + $0xa8] sm:$0xff]
        %v480 = vld [vmem:[%s457 + $0xb0] sm:$0xff]
        %v481 = vld [vmem:[%s457 + $0xb8] sm:$0xff]
        %v482 = vld [vmem:[%s457 + $0xc0] sm:$0xff]
        %v483 = vld [vmem:[%s457 + $0xc8] sm:$0xff]
        %v484 = vld [vmem:[%s457 + $0xd0] sm:$0xff]
        %v485 = vld [vmem:[%s457 + $0xd8] sm:$0xff]
        %v486 = vld [vmem:[%s457 + $0xe0] sm:$0xff]
        %v487 = vld [vmem:[%s457 + $0xe8] sm:$0xff]
        %v488 = vld [vmem:[%s457 + $0xf0] sm:$0xff]
        %v489 = vld [vmem:[%s457 + $0xf8] sm:$0xff]
        %490 = vst [vmem:[#allocation1] ss:$2 sm:$0xff] %v377
        %v491 = vld.sshfl [vmem:[#allocation1] sm:$0xff pattern:$0x75316420]
        %v492 = vld.sshfl [vmem:[#allocation1 + $0x8] sm:$0xff pattern:$0x75316420]
        %495 = vmatpush.msra.mxu0 %v473
        %496 = vmatpush.msra.mxu0 %v472
        %497 = vmatpush.msra.mxu0 %v471
        %498 = vmatpush.msra.mxu0 %v470
        %499 = vmatpush.msra.mxu0 %v469
        %500 = vmatpush.msra.mxu0 %v468
        %501 = vmatpush.msra.mxu0 %v467
        %502 = vmatpush.msra.mxu0 %v466
        %503 = vmatpush.msra.mxu0 %v465
        %504 = vmatpush.msra.mxu0 %v464
        %505 = vmatpush.msra.mxu0 %v463
        %506 = vmatpush.msra.mxu0 %v462
        %507 = vmatpush.msra.mxu0 %v461
        %508 = vmatpush.msra.mxu0 %v460
        %509 = vmatpush.msra.mxu0 %v459
        %510 = vmatpush.msra.mxu0 %v458
        %511 = vmatmul.f32.gmra.mxu0 %v491
        %v512 = vpop.f32.mrf.mxu0
        %v513 = vadd.f32 0.0, %v512
        %514 = vdwg.mxu0
        %515 = vmatpush.msra.mxu0 %v489
        %516 = vmatpush.msra.mxu0 %v488
        %517 = vmatpush.msra.mxu0 %v487
        %518 = vmatpush.msra.mxu0 %v486
        %519 = vmatpush.msra.mxu0 %v485
        %520 = vmatpush.msra.mxu0 %v484
        %521 = vmatpush.msra.mxu0 %v483
        %522 = vmatpush.msra.mxu0 %v482
        %523 = vmatpush.msra.mxu0 %v481
        %524 = vmatpush.msra.mxu0 %v480
        %525 = vmatpush.msra.mxu0 %v479
        %526 = vmatpush.msra.mxu0 %v478
        %527 = vmatpush.msra.mxu0 %v477
        %528 = vmatpush.msra.mxu0 %v476
        %529 = vmatpush.msra.mxu0 %v475
        %530 = vmatpush.msra.mxu0 %v474
        %531 = vmatmul.f32.gmra.mxu0 %v492
        %v532 = vpop.f32.mrf.mxu0
        %v533 = vadd.f32 %v513, %v532
        %534 = vdwg.mxu0
        %s535 = scalar_lea.vmem [#allocation4], 8
        %v536 = vld [vmem:[%s535] sm:$0xff]
        %vm537 = vcmask 31744
        %v539 = vsel %vm537, %v536, 0
        %vm541 = vcmask 1043456
        %v543 = vsel %vm541, %v533, 0
        %545 = vmatpush.msra.mxu0 0.0
        %546 = vmatpush.msra.mxu0 0.0
        %547 = vmatpush.msra.mxu0 0.0
        %548 = vmatpush.msra.mxu0 0.0
        %549 = vmatpush.msra.mxu0 0.0
        %550 = vmatpush.msra.mxu0 0.0
        %551 = vmatpush.msra.mxu0 0.0
        %552 = vmatpush.msra.mxu0 0.0
        %553 = vmatpush.msra.mxu0 0.0
        %554 = vmatpush.msra.mxu0 0.0
        %555 = vmatpush.msra.mxu0 0.0
        %556 = vmatpush.msra.mxu0 0.0
        %557 = vmatpush.msra.mxu0 0.0
        %558 = vmatpush.msra.mxu0 0.0
        %559 = vmatpush.msra.mxu0 0.0
        %560 = vmatpush.msra.mxu0 %v543
        %561 = vmatmul.f32.gmra.mxu0 %v539
        %v562 = vpop.f32.mrf.mxu0
        %v563 = vadd.f32 0.0, %v562
        %564 = vdwg.mxu0
        %v566 = vsel %vm537, %v456, 0
        %v569 = vsel %vm541, %v454, 0
        %571 = vmatpush.msra.mxu0 0.0
        %572 = vmatpush.msra.mxu0 0.0
        %573 = vmatpush.msra.mxu0 0.0
        %574 = vmatpush.msra.mxu0 0.0
        %575 = vmatpush.msra.mxu0 0.0
        %576 = vmatpush.msra.mxu0 0.0
        %577 = vmatpush.msra.mxu0 0.0
        %578 = vmatpush.msra.mxu0 0.0
        %579 = vmatpush.msra.mxu0 0.0
        %580 = vmatpush.msra.mxu0 0.0
        %581 = vmatpush.msra.mxu0 0.0
        %582 = vmatpush.msra.mxu0 0.0
        %583 = vmatpush.msra.mxu0 0.0
        %584 = vmatpush.msra.mxu0 0.0
        %585 = vmatpush.msra.mxu0 0.0
        %586 = vmatpush.msra.mxu0 %v569
        %587 = vmatmul.f32.gmra.mxu0 %v566
        %v588 = vpop.f32.mrf.mxu0
        %v589 = vadd.f32 %v563, %v588
        %590 = vdwg.mxu0
        %s591 = scalar_lea.vmem [#allocation2], 512
        %v592 = vld [vmem:[%s591] sm:$0xff]
        %v593 = vld [vmem:[%s591 + $0x8] sm:$0xff]
        %v594 = vld [vmem:[%s591 + $0x10] sm:$0xff]
        %v595 = vld [vmem:[%s591 + $0x18] sm:$0xff]
        %v596 = vld [vmem:[%s591 + $0x20] sm:$0xff]
        %v597 = vld [vmem:[%s591 + $0x28] sm:$0xff]
        %v598 = vld [vmem:[%s591 + $0x30] sm:$0xff]
        %v599 = vld [vmem:[%s591 + $0x38] sm:$0xff]
        %v600 = vld [vmem:[%s591 + $0x40] sm:$0xff]
        %v601 = vld [vmem:[%s591 + $0x48] sm:$0xff]
        %v602 = vld [vmem:[%s591 + $0x50] sm:$0xff]
        %v603 = vld [vmem:[%s591 + $0x58] sm:$0xff]
        %v604 = vld [vmem:[%s591 + $0x60] sm:$0xff]
        %v605 = vld [vmem:[%s591 + $0x68] sm:$0xff]
        %v606 = vld [vmem:[%s591 + $0x70] sm:$0xff]
        %v607 = vld [vmem:[%s591 + $0x78] sm:$0xff]
        %v608 = vld [vmem:[%s591 + $0x80] sm:$0xff]
        %v609 = vld [vmem:[%s591 + $0x88] sm:$0xff]
        %v610 = vld [vmem:[%s591 + $0x90] sm:$0xff]
        %v611 = vld [vmem:[%s591 + $0x98] sm:$0xff]
        %v612 = vld [vmem:[%s591 + $0xa0] sm:$0xff]
        %v613 = vld [vmem:[%s591 + $0xa8] sm:$0xff]
        %v614 = vld [vmem:[%s591 + $0xb0] sm:$0xff]
        %v615 = vld [vmem:[%s591 + $0xb8] sm:$0xff]
        %v616 = vld [vmem:[%s591 + $0xc0] sm:$0xff]
        %v617 = vld [vmem:[%s591 + $0xc8] sm:$0xff]
        %v618 = vld [vmem:[%s591 + $0xd0] sm:$0xff]
        %v619 = vld [vmem:[%s591 + $0xd8] sm:$0xff]
        %v620 = vld [vmem:[%s591 + $0xe0] sm:$0xff]
        %v621 = vld [vmem:[%s591 + $0xe8] sm:$0xff]
        %v622 = vld [vmem:[%s591 + $0xf0] sm:$0xff]
        %v623 = vld [vmem:[%s591 + $0xf8] sm:$0xff]
        %624 = vst [vmem:[#allocation1] ss:$2 sm:$0xff] %v377
        %v625 = vld.sshfl [vmem:[#allocation1] sm:$0xff pattern:$0x75316420]
        %v626 = vld.sshfl [vmem:[#allocation1 + $0x8] sm:$0xff pattern:$0x75316420]
        %629 = vmatpush.msra.mxu0 %v607
        %630 = vmatpush.msra.mxu0 %v606
        %631 = vmatpush.msra.mxu0 %v605
        %632 = vmatpush.msra.mxu0 %v604
        %633 = vmatpush.msra.mxu0 %v603
        %634 = vmatpush.msra.mxu0 %v602
        %635 = vmatpush.msra.mxu0 %v601
        %636 = vmatpush.msra.mxu0 %v600
        %637 = vmatpush.msra.mxu0 %v599
        %638 = vmatpush.msra.mxu0 %v598
        %639 = vmatpush.msra.mxu0 %v597
        %640 = vmatpush.msra.mxu0 %v596
        %641 = vmatpush.msra.mxu0 %v595
        %642 = vmatpush.msra.mxu0 %v594
        %643 = vmatpush.msra.mxu0 %v593
        %644 = vmatpush.msra.mxu0 %v592
        %645 = vmatmul.f32.gmra.mxu0 %v625
        %v646 = vpop.f32.mrf.mxu0
        %v647 = vadd.f32 0.0, %v646
        %648 = vdwg.mxu0
        %649 = vmatpush.msra.mxu0 %v623
        %650 = vmatpush.msra.mxu0 %v622
        %651 = vmatpush.msra.mxu0 %v621
        %652 = vmatpush.msra.mxu0 %v620
        %653 = vmatpush.msra.mxu0 %v619
        %654 = vmatpush.msra.mxu0 %v618
        %655 = vmatpush.msra.mxu0 %v617
        %656 = vmatpush.msra.mxu0 %v616
        %657 = vmatpush.msra.mxu0 %v615
        %658 = vmatpush.msra.mxu0 %v614
        %659 = vmatpush.msra.mxu0 %v613
        %660 = vmatpush.msra.mxu0 %v612
        %661 = vmatpush.msra.mxu0 %v611
        %662 = vmatpush.msra.mxu0 %v610
        %663 = vmatpush.msra.mxu0 %v609
        %664 = vmatpush.msra.mxu0 %v608
        %665 = vmatmul.f32.gmra.mxu0 %v626
        %v666 = vpop.f32.mrf.mxu0
        %v667 = vadd.f32 %v647, %v666
        %668 = vdwg.mxu0
        %s669 = scalar_lea.vmem [#allocation4], 16
        %v670 = vld [vmem:[%s669] sm:$0xff]
        %v672 = vsel %vm537, %v670, 0
        %v675 = vsel %vm541, %v667, 0
        %677 = vmatpush.msra.mxu0 0.0
        %678 = vmatpush.msra.mxu0 0.0
        %679 = vmatpush.msra.mxu0 0.0
        %680 = vmatpush.msra.mxu0 0.0
        %681 = vmatpush.msra.mxu0 0.0
        %682 = vmatpush.msra.mxu0 0.0
        %683 = vmatpush.msra.mxu0 0.0
        %684 = vmatpush.msra.mxu0 0.0
        %685 = vmatpush.msra.mxu0 0.0
        %686 = vmatpush.msra.mxu0 0.0
        %687 = vmatpush.msra.mxu0 0.0
        %688 = vmatpush.msra.mxu0 0.0
        %689 = vmatpush.msra.mxu0 0.0
        %690 = vmatpush.msra.mxu0 0.0
        %691 = vmatpush.msra.mxu0 0.0
        %692 = vmatpush.msra.mxu0 %v675
        %693 = vmatmul.f32.gmra.mxu0 %v672
        %v694 = vpop.f32.mrf.mxu0
        %v695 = vadd.f32 0.0, %v694
        %696 = vdwg.mxu0
        %v697 = vadd.f32 %v589, %v695
        %s698 = scalar_lea.vmem [#allocation2], 768
        %v699 = vld [vmem:[%s698] sm:$0xff]
        %v700 = vld [vmem:[%s698 + $0x8] sm:$0xff]
        %v701 = vld [vmem:[%s698 + $0x10] sm:$0xff]
        %v702 = vld [vmem:[%s698 + $0x18] sm:$0xff]
        %v703 = vld [vmem:[%s698 + $0x20] sm:$0xff]
        %v704 = vld [vmem:[%s698 + $0x28] sm:$0xff]
        %v705 = vld [vmem:[%s698 + $0x30] sm:$0xff]
        %v706 = vld [vmem:[%s698 + $0x38] sm:$0xff]
        %v707 = vld [vmem:[%s698 + $0x40] sm:$0xff]
        %v708 = vld [vmem:[%s698 + $0x48] sm:$0xff]
        %v709 = vld [vmem:[%s698 + $0x50] sm:$0xff]
        %v710 = vld [vmem:[%s698 + $0x58] sm:$0xff]
        %v711 = vld [vmem:[%s698 + $0x60] sm:$0xff]
        %v712 = vld [vmem:[%s698 + $0x68] sm:$0xff]
        %v713 = vld [vmem:[%s698 + $0x70] sm:$0xff]
        %v714 = vld [vmem:[%s698 + $0x78] sm:$0xff]
        %v715 = vld [vmem:[%s698 + $0x80] sm:$0xff]
        %v716 = vld [vmem:[%s698 + $0x88] sm:$0xff]
        %v717 = vld [vmem:[%s698 + $0x90] sm:$0xff]
        %v718 = vld [vmem:[%s698 + $0x98] sm:$0xff]
        %v719 = vld [vmem:[%s698 + $0xa0] sm:$0xff]
        %v720 = vld [vmem:[%s698 + $0xa8] sm:$0xff]
        %v721 = vld [vmem:[%s698 + $0xb0] sm:$0xff]
        %v722 = vld [vmem:[%s698 + $0xb8] sm:$0xff]
        %v723 = vld [vmem:[%s698 + $0xc0] sm:$0xff]
        %v724 = vld [vmem:[%s698 + $0xc8] sm:$0xff]
        %v725 = vld [vmem:[%s698 + $0xd0] sm:$0xff]
        %v726 = vld [vmem:[%s698 + $0xd8] sm:$0xff]
        %v727 = vld [vmem:[%s698 + $0xe0] sm:$0xff]
        %v728 = vld [vmem:[%s698 + $0xe8] sm:$0xff]
        %v729 = vld [vmem:[%s698 + $0xf0] sm:$0xff]
        %v730 = vld [vmem:[%s698 + $0xf8] sm:$0xff]
        %731 = vst [vmem:[#allocation1] ss:$2 sm:$0xff] %v377
        %v732 = vld.sshfl [vmem:[#allocation1] sm:$0xff pattern:$0x75316420]
        %v733 = vld.sshfl [vmem:[#allocation1 + $0x8] sm:$0xff pattern:$0x75316420]
        %736 = vmatpush.msra.mxu0 %v714
        %737 = vmatpush.msra.mxu0 %v713
        %738 = vmatpush.msra.mxu0 %v712
        %739 = vmatpush.msra.mxu0 %v711
        %740 = vmatpush.msra.mxu0 %v710
        %741 = vmatpush.msra.mxu0 %v709
        %742 = vmatpush.msra.mxu0 %v708
        %743 = vmatpush.msra.mxu0 %v707
        %744 = vmatpush.msra.mxu0 %v706
        %745 = vmatpush.msra.mxu0 %v705
        %746 = vmatpush.msra.mxu0 %v704
        %747 = vmatpush.msra.mxu0 %v703
        %748 = vmatpush.msra.mxu0 %v702
        %749 = vmatpush.msra.mxu0 %v701
        %750 = vmatpush.msra.mxu0 %v700
        %751 = vmatpush.msra.mxu0 %v699
        %752 = vmatmul.f32.gmra.mxu0 %v732
        %v753 = vpop.f32.mrf.mxu0
        %v754 = vadd.f32 0.0, %v753
        %755 = vdwg.mxu0
        %756 = vmatpush.msra.mxu0 %v730
        %757 = vmatpush.msra.mxu0 %v729
        %758 = vmatpush.msra.mxu0 %v728
        %759 = vmatpush.msra.mxu0 %v727
        %760 = vmatpush.msra.mxu0 %v726
        %761 = vmatpush.msra.mxu0 %v725
        %762 = vmatpush.msra.mxu0 %v724
        %763 = vmatpush.msra.mxu0 %v723
        %764 = vmatpush.msra.mxu0 %v722
        %765 = vmatpush.msra.mxu0 %v721
        %766 = vmatpush.msra.mxu0 %v720
        %767 = vmatpush.msra.mxu0 %v719
        %768 = vmatpush.msra.mxu0 %v718
        %769 = vmatpush.msra.mxu0 %v717
        %770 = vmatpush.msra.mxu0 %v716
        %771 = vmatpush.msra.mxu0 %v715
        %772 = vmatmul.f32.gmra.mxu0 %v733
        %v773 = vpop.f32.mrf.mxu0
        %v774 = vadd.f32 %v754, %v773
        %775 = vdwg.mxu0
        %s776 = scalar_lea.vmem [#allocation4], 24
        %v777 = vld [vmem:[%s776] sm:$0xff]
        %v779 = vsel %vm537, %v777, 0
        %v782 = vsel %vm541, %v774, 0
        %784 = vmatpush.msra.mxu0 0.0
        %785 = vmatpush.msra.mxu0 0.0
        %786 = vmatpush.msra.mxu0 0.0
        %787 = vmatpush.msra.mxu0 0.0
        %788 = vmatpush.msra.mxu0 0.0
        %789 = vmatpush.msra.mxu0 0.0
        %790 = vmatpush.msra.mxu0 0.0
        %791 = vmatpush.msra.mxu0 0.0
        %792 = vmatpush.msra.mxu0 0.0
        %793 = vmatpush.msra.mxu0 0.0
        %794 = vmatpush.msra.mxu0 0.0
        %795 = vmatpush.msra.mxu0 0.0
        %796 = vmatpush.msra.mxu0 0.0
        %797 = vmatpush.msra.mxu0 0.0
        %798 = vmatpush.msra.mxu0 0.0
        %799 = vmatpush.msra.mxu0 %v782
        %800 = vmatmul.f32.gmra.mxu0 %v779
        %v801 = vpop.f32.mrf.mxu0
        %v802 = vadd.f32 0.0, %v801
        %803 = vdwg.mxu0
        %v804 = vadd.f32 %v697, %v802
        %s805 = scalar_lea.vmem [#allocation2], 1024
        %v806 = vld [vmem:[%s805] sm:$0xff]
        %v807 = vld [vmem:[%s805 + $0x8] sm:$0xff]
        %v808 = vld [vmem:[%s805 + $0x10] sm:$0xff]
        %v809 = vld [vmem:[%s805 + $0x18] sm:$0xff]
        %v810 = vld [vmem:[%s805 + $0x20] sm:$0xff]
        %v811 = vld [vmem:[%s805 + $0x28] sm:$0xff]
        %v812 = vld [vmem:[%s805 + $0x30] sm:$0xff]
        %v813 = vld [vmem:[%s805 + $0x38] sm:$0xff]
        %v814 = vld [vmem:[%s805 + $0x40] sm:$0xff]
        %v815 = vld [vmem:[%s805 + $0x48] sm:$0xff]
        %v816 = vld [vmem:[%s805 + $0x50] sm:$0xff]
        %v817 = vld [vmem:[%s805 + $0x58] sm:$0xff]
        %v818 = vld [vmem:[%s805 + $0x60] sm:$0xff]
        %v819 = vld [vmem:[%s805 + $0x68] sm:$0xff]
        %v820 = vld [vmem:[%s805 + $0x70] sm:$0xff]
        %v821 = vld [vmem:[%s805 + $0x78] sm:$0xff]
        %v822 = vld [vmem:[%s805 + $0x80] sm:$0xff]
        %v823 = vld [vmem:[%s805 + $0x88] sm:$0xff]
        %v824 = vld [vmem:[%s805 + $0x90] sm:$0xff]
        %v825 = vld [vmem:[%s805 + $0x98] sm:$0xff]
        %v826 = vld [vmem:[%s805 + $0xa0] sm:$0xff]
        %v827 = vld [vmem:[%s805 + $0xa8] sm:$0xff]
        %v828 = vld [vmem:[%s805 + $0xb0] sm:$0xff]
        %v829 = vld [vmem:[%s805 + $0xb8] sm:$0xff]
        %v830 = vld [vmem:[%s805 + $0xc0] sm:$0xff]
        %v831 = vld [vmem:[%s805 + $0xc8] sm:$0xff]
        %v832 = vld [vmem:[%s805 + $0xd0] sm:$0xff]
        %v833 = vld [vmem:[%s805 + $0xd8] sm:$0xff]
        %v834 = vld [vmem:[%s805 + $0xe0] sm:$0xff]
        %v835 = vld [vmem:[%s805 + $0xe8] sm:$0xff]
        %v836 = vld [vmem:[%s805 + $0xf0] sm:$0xff]
        %v837 = vld [vmem:[%s805 + $0xf8] sm:$0xff]
        %838 = vst [vmem:[#allocation1] ss:$2 sm:$0xff] %v377
        %v839 = vld.sshfl [vmem:[#allocation1] sm:$0xff pattern:$0x75316420]
        %v840 = vld.sshfl [vmem:[#allocation1 + $0x8] sm:$0xff pattern:$0x75316420]
        %843 = vmatpush.msra.mxu0 %v821
        %844 = vmatpush.msra.mxu0 %v820
        %845 = vmatpush.msra.mxu0 %v819
        %846 = vmatpush.msra.mxu0 %v818
        %847 = vmatpush.msra.mxu0 %v817
        %848 = vmatpush.msra.mxu0 %v816
        %849 = vmatpush.msra.mxu0 %v815
        %850 = vmatpush.msra.mxu0 %v814
        %851 = vmatpush.msra.mxu0 %v813
        %852 = vmatpush.msra.mxu0 %v812
        %853 = vmatpush.msra.mxu0 %v811
        %854 = vmatpush.msra.mxu0 %v810
        %855 = vmatpush.msra.mxu0 %v809
        %856 = vmatpush.msra.mxu0 %v808
        %857 = vmatpush.msra.mxu0 %v807
        %858 = vmatpush.msra.mxu0 %v806
        %859 = vmatmul.f32.gmra.mxu0 %v839
        %v860 = vpop.f32.mrf.mxu0
        %v861 = vadd.f32 0.0, %v860
        %862 = vdwg.mxu0
        %863 = vmatpush.msra.mxu0 %v837
        %864 = vmatpush.msra.mxu0 %v836
        %865 = vmatpush.msra.mxu0 %v835
        %866 = vmatpush.msra.mxu0 %v834
        %867 = vmatpush.msra.mxu0 %v833
        %868 = vmatpush.msra.mxu0 %v832
        %869 = vmatpush.msra.mxu0 %v831
        %870 = vmatpush.msra.mxu0 %v830
        %871 = vmatpush.msra.mxu0 %v829
        %872 = vmatpush.msra.mxu0 %v828
        %873 = vmatpush.msra.mxu0 %v827
        %874 = vmatpush.msra.mxu0 %v826
        %875 = vmatpush.msra.mxu0 %v825
        %876 = vmatpush.msra.mxu0 %v824
        %877 = vmatpush.msra.mxu0 %v823
        %878 = vmatpush.msra.mxu0 %v822
        %879 = vmatmul.f32.gmra.mxu0 %v840
        %v880 = vpop.f32.mrf.mxu0
        %v881 = vadd.f32 %v861, %v880
        %882 = vdwg.mxu0
        %s883 = scalar_lea.vmem [#allocation4], 32
        %v884 = vld [vmem:[%s883] sm:$0xff]
        %v886 = vsel %vm537, %v884, 0
        %v889 = vsel %vm541, %v881, 0
        %891 = vmatpush.msra.mxu0 0.0
        %892 = vmatpush.msra.mxu0 0.0
        %893 = vmatpush.msra.mxu0 0.0
        %894 = vmatpush.msra.mxu0 0.0
        %895 = vmatpush.msra.mxu0 0.0
        %896 = vmatpush.msra.mxu0 0.0
        %897 = vmatpush.msra.mxu0 0.0
        %898 = vmatpush.msra.mxu0 0.0
        %899 = vmatpush.msra.mxu0 0.0
        %900 = vmatpush.msra.mxu0 0.0
        %901 = vmatpush.msra.mxu0 0.0
        %902 = vmatpush.msra.mxu0 0.0
        %903 = vmatpush.msra.mxu0 0.0
        %904 = vmatpush.msra.mxu0 0.0
        %905 = vmatpush.msra.mxu0 0.0
        %906 = vmatpush.msra.mxu0 %v889
        %907 = vmatmul.f32.gmra.mxu0 %v886
        %v908 = vpop.f32.mrf.mxu0
        %v909 = vadd.f32 0.0, %v908
        %910 = vdwg.mxu0
        %v911 = vadd.f32 %v804, %v909
        %s912 = scalar_lea.vmem [#allocation2], 1280
        %v913 = vld [vmem:[%s912] sm:$0xff]
        %v914 = vld [vmem:[%s912 + $0x8] sm:$0xff]
        %v915 = vld [vmem:[%s912 + $0x10] sm:$0xff]
        %v916 = vld [vmem:[%s912 + $0x18] sm:$0xff]
        %v917 = vld [vmem:[%s912 + $0x20] sm:$0xff]
        %v918 = vld [vmem:[%s912 + $0x28] sm:$0xff]
        %v919 = vld [vmem:[%s912 + $0x30] sm:$0xff]
        %v920 = vld [vmem:[%s912 + $0x38] sm:$0xff]
        %v921 = vld [vmem:[%s912 + $0x40] sm:$0xff]
        %v922 = vld [vmem:[%s912 + $0x48] sm:$0xff]
        %v923 = vld [vmem:[%s912 + $0x50] sm:$0xff]
        %v924 = vld [vmem:[%s912 + $0x58] sm:$0xff]
        %v925 = vld [vmem:[%s912 + $0x60] sm:$0xff]
        %v926 = vld [vmem:[%s912 + $0x68] sm:$0xff]
        %v927 = vld [vmem:[%s912 + $0x70] sm:$0xff]
        %v928 = vld [vmem:[%s912 + $0x78] sm:$0xff]
        %v929 = vld [vmem:[%s912 + $0x80] sm:$0xff]
        %v930 = vld [vmem:[%s912 + $0x88] sm:$0xff]
        %v931 = vld [vmem:[%s912 + $0x90] sm:$0xff]
        %v932 = vld [vmem:[%s912 + $0x98] sm:$0xff]
        %v933 = vld [vmem:[%s912 + $0xa0] sm:$0xff]
        %v934 = vld [vmem:[%s912 + $0xa8] sm:$0xff]
        %v935 = vld [vmem:[%s912 + $0xb0] sm:$0xff]
        %v936 = vld [vmem:[%s912 + $0xb8] sm:$0xff]
        %v937 = vld [vmem:[%s912 + $0xc0] sm:$0xff]
        %v938 = vld [vmem:[%s912 + $0xc8] sm:$0xff]
        %v939 = vld [vmem:[%s912 + $0xd0] sm:$0xff]
        %v940 = vld [vmem:[%s912 + $0xd8] sm:$0xff]
        %v941 = vld [vmem:[%s912 + $0xe0] sm:$0xff]
        %v942 = vld [vmem:[%s912 + $0xe8] sm:$0xff]
        %v943 = vld [vmem:[%s912 + $0xf0] sm:$0xff]
        %v944 = vld [vmem:[%s912 + $0xf8] sm:$0xff]
        %945 = vst [vmem:[#allocation1] ss:$2 sm:$0xff] %v377
        %v946 = vld.sshfl [vmem:[#allocation1] sm:$0xff pattern:$0x75316420]
        %v947 = vld.sshfl [vmem:[#allocation1 + $0x8] sm:$0xff pattern:$0x75316420]
        %950 = vmatpush.msra.mxu0 %v928
        %951 = vmatpush.msra.mxu0 %v927
        %952 = vmatpush.msra.mxu0 %v926
        %953 = vmatpush.msra.mxu0 %v925
        %954 = vmatpush.msra.mxu0 %v924
        %955 = vmatpush.msra.mxu0 %v923
        %956 = vmatpush.msra.mxu0 %v922
        %957 = vmatpush.msra.mxu0 %v921
        %958 = vmatpush.msra.mxu0 %v920
        %959 = vmatpush.msra.mxu0 %v919
        %960 = vmatpush.msra.mxu0 %v918
        %961 = vmatpush.msra.mxu0 %v917
        %962 = vmatpush.msra.mxu0 %v916
        %963 = vmatpush.msra.mxu0 %v915
        %964 = vmatpush.msra.mxu0 %v914
        %965 = vmatpush.msra.mxu0 %v913
        %966 = vmatmul.f32.gmra.mxu0 %v946
        %v967 = vpop.f32.mrf.mxu0
        %v968 = vadd.f32 0.0, %v967
        %969 = vdwg.mxu0
        %970 = vmatpush.msra.mxu0 %v944
        %971 = vmatpush.msra.mxu0 %v943
        %972 = vmatpush.msra.mxu0 %v942
        %973 = vmatpush.msra.mxu0 %v941
        %974 = vmatpush.msra.mxu0 %v940
        %975 = vmatpush.msra.mxu0 %v939
        %976 = vmatpush.msra.mxu0 %v938
        %977 = vmatpush.msra.mxu0 %v937
        %978 = vmatpush.msra.mxu0 %v936
        %979 = vmatpush.msra.mxu0 %v935
        %980 = vmatpush.msra.mxu0 %v934
        %981 = vmatpush.msra.mxu0 %v933
        %982 = vmatpush.msra.mxu0 %v932
        %983 = vmatpush.msra.mxu0 %v931
        %984 = vmatpush.msra.mxu0 %v930
        %985 = vmatpush.msra.mxu0 %v929
        %986 = vmatmul.f32.gmra.mxu0 %v947
        %v987 = vpop.f32.mrf.mxu0
        %v988 = vadd.f32 %v968, %v987
        %989 = vdwg.mxu0
        %s990 = scalar_lea.vmem [#allocation4], 40
        %v991 = vld [vmem:[%s990] sm:$0xff]
        %v993 = vsel %vm537, %v991, 0
        %v996 = vsel %vm541, %v988, 0
        %998 = vmatpush.msra.mxu0 0.0
        %999 = vmatpush.msra.mxu0 0.0
        %1000 = vmatpush.msra.mxu0 0.0
        %1001 = vmatpush.msra.mxu0 0.0
        %1002 = vmatpush.msra.mxu0 0.0
        %1003 = vmatpush.msra.mxu0 0.0
        %1004 = vmatpush.msra.mxu0 0.0
        %1005 = vmatpush.msra.mxu0 0.0
        %1006 = vmatpush.msra.mxu0 0.0
        %1007 = vmatpush.msra.mxu0 0.0
        %1008 = vmatpush.msra.mxu0 0.0
        %1009 = vmatpush.msra.mxu0 0.0
        %1010 = vmatpush.msra.mxu0 0.0
        %1011 = vmatpush.msra.mxu0 0.0
        %1012 = vmatpush.msra.mxu0 0.0
        %1013 = vmatpush.msra.mxu0 %v996
        %1014 = vmatmul.f32.gmra.mxu0 %v993
        %v1015 = vpop.f32.mrf.mxu0
        %v1016 = vadd.f32 0.0, %v1015
        %1017 = vdwg.mxu0
        %v1018 = vadd.f32 %v911, %v1016
        %s1019 = scalar_lea.vmem [#allocation2], 1536
        %v1020 = vld [vmem:[%s1019] sm:$0xff]
        %v1021 = vld [vmem:[%s1019 + $0x8] sm:$0xff]
        %v1022 = vld [vmem:[%s1019 + $0x10] sm:$0xff]
        %v1023 = vld [vmem:[%s1019 + $0x18] sm:$0xff]
        %v1024 = vld [vmem:[%s1019 + $0x20] sm:$0xff]
        %v1025 = vld [vmem:[%s1019 + $0x28] sm:$0xff]
        %v1026 = vld [vmem:[%s1019 + $0x30] sm:$0xff]
        %v1027 = vld [vmem:[%s1019 + $0x38] sm:$0xff]
        %v1028 = vld [vmem:[%s1019 + $0x40] sm:$0xff]
        %v1029 = vld [vmem:[%s1019 + $0x48] sm:$0xff]
        %v1030 = vld [vmem:[%s1019 + $0x50] sm:$0xff]
        %v1031 = vld [vmem:[%s1019 + $0x58] sm:$0xff]
        %v1032 = vld [vmem:[%s1019 + $0x60] sm:$0xff]
        %v1033 = vld [vmem:[%s1019 + $0x68] sm:$0xff]
        %v1034 = vld [vmem:[%s1019 + $0x70] sm:$0xff]
        %v1035 = vld [vmem:[%s1019 + $0x78] sm:$0xff]
        %v1036 = vld [vmem:[%s1019 + $0x80] sm:$0xff]
        %v1037 = vld [vmem:[%s1019 + $0x88] sm:$0xff]
        %v1038 = vld [vmem:[%s1019 + $0x90] sm:$0xff]
        %v1039 = vld [vmem:[%s1019 + $0x98] sm:$0xff]
        %v1040 = vld [vmem:[%s1019 + $0xa0] sm:$0xff]
        %v1041 = vld [vmem:[%s1019 + $0xa8] sm:$0xff]
        %v1042 = vld [vmem:[%s1019 + $0xb0] sm:$0xff]
        %v1043 = vld [vmem:[%s1019 + $0xb8] sm:$0xff]
        %v1044 = vld [vmem:[%s1019 + $0xc0] sm:$0xff]
        %v1045 = vld [vmem:[%s1019 + $0xc8] sm:$0xff]
        %v1046 = vld [vmem:[%s1019 + $0xd0] sm:$0xff]
        %v1047 = vld [vmem:[%s1019 + $0xd8] sm:$0xff]
        %v1048 = vld [vmem:[%s1019 + $0xe0] sm:$0xff]
        %v1049 = vld [vmem:[%s1019 + $0xe8] sm:$0xff]
        %v1050 = vld [vmem:[%s1019 + $0xf0] sm:$0xff]
        %v1051 = vld [vmem:[%s1019 + $0xf8] sm:$0xff]
        %1052 = vst [vmem:[#allocation1] ss:$2 sm:$0xff] %v377
        %v1053 = vld.sshfl [vmem:[#allocation1] sm:$0xff pattern:$0x75316420]
        %v1054 = vld.sshfl [vmem:[#allocation1 + $0x8] sm:$0xff pattern:$0x75316420]
        %1057 = vmatpush.msra.mxu0 %v1035
        %1058 = vmatpush.msra.mxu0 %v1034
        %1059 = vmatpush.msra.mxu0 %v1033
        %1060 = vmatpush.msra.mxu0 %v1032
        %1061 = vmatpush.msra.mxu0 %v1031
        %1062 = vmatpush.msra.mxu0 %v1030
        %1063 = vmatpush.msra.mxu0 %v1029
        %1064 = vmatpush.msra.mxu0 %v1028
        %1065 = vmatpush.msra.mxu0 %v1027
        %1066 = vmatpush.msra.mxu0 %v1026
        %1067 = vmatpush.msra.mxu0 %v1025
        %1068 = vmatpush.msra.mxu0 %v1024
        %1069 = vmatpush.msra.mxu0 %v1023
        %1070 = vmatpush.msra.mxu0 %v1022
        %1071 = vmatpush.msra.mxu0 %v1021
        %1072 = vmatpush.msra.mxu0 %v1020
        %1073 = vmatmul.f32.gmra.mxu0 %v1053
        %v1074 = vpop.f32.mrf.mxu0
        %v1075 = vadd.f32 0.0, %v1074
        %1076 = vdwg.mxu0
        %1077 = vmatpush.msra.mxu0 %v1051
        %1078 = vmatpush.msra.mxu0 %v1050
        %1079 = vmatpush.msra.mxu0 %v1049
        %1080 = vmatpush.msra.mxu0 %v1048
        %1081 = vmatpush.msra.mxu0 %v1047
        %1082 = vmatpush.msra.mxu0 %v1046
        %1083 = vmatpush.msra.mxu0 %v1045
        %1084 = vmatpush.msra.mxu0 %v1044
        %1085 = vmatpush.msra.mxu0 %v1043
        %1086 = vmatpush.msra.mxu0 %v1042
        %1087 = vmatpush.msra.mxu0 %v1041
        %1088 = vmatpush.msra.mxu0 %v1040
        %1089 = vmatpush.msra.mxu0 %v1039
        %1090 = vmatpush.msra.mxu0 %v1038
        %1091 = vmatpush.msra.mxu0 %v1037
        %1092 = vmatpush.msra.mxu0 %v1036
        %1093 = vmatmul.f32.gmra.mxu0 %v1054
        %v1094 = vpop.f32.mrf.mxu0
        %v1095 = vadd.f32 %v1075, %v1094
        %1096 = vdwg.mxu0
        %s1097 = scalar_lea.vmem [#allocation4], 48
        %v1098 = vld [vmem:[%s1097] sm:$0xff]
        %v1100 = vsel %vm537, %v1098, 0
        %v1103 = vsel %vm541, %v1095, 0
        %1105 = vmatpush.msra.mxu0 0.0
        %1106 = vmatpush.msra.mxu0 0.0
        %1107 = vmatpush.msra.mxu0 0.0
        %1108 = vmatpush.msra.mxu0 0.0
        %1109 = vmatpush.msra.mxu0 0.0
        %1110 = vmatpush.msra.mxu0 0.0
        %1111 = vmatpush.msra.mxu0 0.0
        %1112 = vmatpush.msra.mxu0 0.0
        %1113 = vmatpush.msra.mxu0 0.0
        %1114 = vmatpush.msra.mxu0 0.0
        %1115 = vmatpush.msra.mxu0 0.0
        %1116 = vmatpush.msra.mxu0 0.0
        %1117 = vmatpush.msra.mxu0 0.0
        %1118 = vmatpush.msra.mxu0 0.0
        %1119 = vmatpush.msra.mxu0 0.0
        %1120 = vmatpush.msra.mxu0 %v1103
        %1121 = vmatmul.f32.gmra.mxu0 %v1100
        %v1122 = vpop.f32.mrf.mxu0
        %v1123 = vadd.f32 0.0, %v1122
        %1124 = vdwg.mxu0
        %v1125 = vadd.f32 %v1018, %v1123
        %s1126 = scalar_lea.vmem [#allocation2], 1792
        %v1127 = vld [vmem:[%s1126] sm:$0xff]
        %v1128 = vld [vmem:[%s1126 + $0x8] sm:$0xff]
        %v1129 = vld [vmem:[%s1126 + $0x10] sm:$0xff]
        %v1130 = vld [vmem:[%s1126 + $0x18] sm:$0xff]
        %v1131 = vld [vmem:[%s1126 + $0x20] sm:$0xff]
        %v1132 = vld [vmem:[%s1126 + $0x28] sm:$0xff]
        %v1133 = vld [vmem:[%s1126 + $0x30] sm:$0xff]
        %v1134 = vld [vmem:[%s1126 + $0x38] sm:$0xff]
        %v1135 = vld [vmem:[%s1126 + $0x40] sm:$0xff]
        %v1136 = vld [vmem:[%s1126 + $0x48] sm:$0xff]
        %v1137 = vld [vmem:[%s1126 + $0x50] sm:$0xff]
        %v1138 = vld [vmem:[%s1126 + $0x58] sm:$0xff]
        %v1139 = vld [vmem:[%s1126 + $0x60] sm:$0xff]
        %v1140 = vld [vmem:[%s1126 + $0x68] sm:$0xff]
        %v1141 = vld [vmem:[%s1126 + $0x70] sm:$0xff]
        %v1142 = vld [vmem:[%s1126 + $0x78] sm:$0xff]
        %v1143 = vld [vmem:[%s1126 + $0x80] sm:$0xff]
        %v1144 = vld [vmem:[%s1126 + $0x88] sm:$0xff]
        %v1145 = vld [vmem:[%s1126 + $0x90] sm:$0xff]
        %v1146 = vld [vmem:[%s1126 + $0x98] sm:$0xff]
        %v1147 = vld [vmem:[%s1126 + $0xa0] sm:$0xff]
        %v1148 = vld [vmem:[%s1126 + $0xa8] sm:$0xff]
        %v1149 = vld [vmem:[%s1126 + $0xb0] sm:$0xff]
        %v1150 = vld [vmem:[%s1126 + $0xb8] sm:$0xff]
        %v1151 = vld [vmem:[%s1126 + $0xc0] sm:$0xff]
        %v1152 = vld [vmem:[%s1126 + $0xc8] sm:$0xff]
        %v1153 = vld [vmem:[%s1126 + $0xd0] sm:$0xff]
        %v1154 = vld [vmem:[%s1126 + $0xd8] sm:$0xff]
        %v1155 = vld [vmem:[%s1126 + $0xe0] sm:$0xff]
        %v1156 = vld [vmem:[%s1126 + $0xe8] sm:$0xff]
        %v1157 = vld [vmem:[%s1126 + $0xf0] sm:$0xff]
        %v1158 = vld [vmem:[%s1126 + $0xf8] sm:$0xff]
        %1159 = vst [vmem:[#allocation1] ss:$2 sm:$0xff] %v377
        %v1160 = vld.sshfl [vmem:[#allocation1] sm:$0xff pattern:$0x75316420]
        %v1161 = vld.sshfl [vmem:[#allocation1 + $0x8] sm:$0xff pattern:$0x75316420]
        %1164 = vmatpush.msra.mxu0 %v1142
        %1165 = vmatpush.msra.mxu0 %v1141
        %1166 = vmatpush.msra.mxu0 %v1140
        %1167 = vmatpush.msra.mxu0 %v1139
        %1168 = vmatpush.msra.mxu0 %v1138
        %1169 = vmatpush.msra.mxu0 %v1137
        %1170 = vmatpush.msra.mxu0 %v1136
        %1171 = vmatpush.msra.mxu0 %v1135
        %1172 = vmatpush.msra.mxu0 %v1134
        %1173 = vmatpush.msra.mxu0 %v1133
        %1174 = vmatpush.msra.mxu0 %v1132
        %1175 = vmatpush.msra.mxu0 %v1131
        %1176 = vmatpush.msra.mxu0 %v1130
        %1177 = vmatpush.msra.mxu0 %v1129
        %1178 = vmatpush.msra.mxu0 %v1128
        %1179 = vmatpush.msra.mxu0 %v1127
        %1180 = vmatmul.f32.gmra.mxu0 %v1160
        %v1181 = vpop.f32.mrf.mxu0
        %v1182 = vadd.f32 0.0, %v1181
        %1183 = vdwg.mxu0
        %1184 = vmatpush.msra.mxu0 %v1158
        %1185 = vmatpush.msra.mxu0 %v1157
        %1186 = vmatpush.msra.mxu0 %v1156
        %1187 = vmatpush.msra.mxu0 %v1155
        %1188 = vmatpush.msra.mxu0 %v1154
        %1189 = vmatpush.msra.mxu0 %v1153
        %1190 = vmatpush.msra.mxu0 %v1152
        %1191 = vmatpush.msra.mxu0 %v1151
        %1192 = vmatpush.msra.mxu0 %v1150
        %1193 = vmatpush.msra.mxu0 %v1149
        %1194 = vmatpush.msra.mxu0 %v1148
        %1195 = vmatpush.msra.mxu0 %v1147
        %1196 = vmatpush.msra.mxu0 %v1146
        %1197 = vmatpush.msra.mxu0 %v1145
        %1198 = vmatpush.msra.mxu0 %v1144
        %1199 = vmatpush.msra.mxu0 %v1143
        %1200 = vmatmul.f32.gmra.mxu0 %v1161
        %v1201 = vpop.f32.mrf.mxu0
        %v1202 = vadd.f32 %v1182, %v1201
        %1203 = vdwg.mxu0
        %s1204 = scalar_lea.vmem [#allocation4], 56
        %v1205 = vld [vmem:[%s1204] sm:$0xff]
        %v1207 = vsel %vm537, %v1205, 0
        %v1210 = vsel %vm541, %v1202, 0
        %1212 = vmatpush.msra.mxu0 0.0
        %1213 = vmatpush.msra.mxu0 0.0
        %1214 = vmatpush.msra.mxu0 0.0
        %1215 = vmatpush.msra.mxu0 0.0
        %1216 = vmatpush.msra.mxu0 0.0
        %1217 = vmatpush.msra.mxu0 0.0
        %1218 = vmatpush.msra.mxu0 0.0
        %1219 = vmatpush.msra.mxu0 0.0
        %1220 = vmatpush.msra.mxu0 0.0
        %1221 = vmatpush.msra.mxu0 0.0
        %1222 = vmatpush.msra.mxu0 0.0
        %1223 = vmatpush.msra.mxu0 0.0
        %1224 = vmatpush.msra.mxu0 0.0
        %1225 = vmatpush.msra.mxu0 0.0
        %1226 = vmatpush.msra.mxu0 0.0
        %1227 = vmatpush.msra.mxu0 %v1210
        %1228 = vmatmul.f32.gmra.mxu0 %v1207
        %v1229 = vpop.f32.mrf.mxu0
        %v1230 = vadd.f32 0.0, %v1229
        %1231 = vdwg.mxu0
        %v1232 = vadd.f32 %v1125, %v1230
        %s1233 = scalar_lea.vmem [#allocation2], 2048
        %v1234 = vld [vmem:[%s1233] sm:$0xff]
        %v1235 = vld [vmem:[%s1233 + $0x8] sm:$0xff]
        %v1236 = vld [vmem:[%s1233 + $0x10] sm:$0xff]
        %v1237 = vld [vmem:[%s1233 + $0x18] sm:$0xff]
        %v1238 = vld [vmem:[%s1233 + $0x20] sm:$0xff]
        %v1239 = vld [vmem:[%s1233 + $0x28] sm:$0xff]
        %v1240 = vld [vmem:[%s1233 + $0x30] sm:$0xff]
        %v1241 = vld [vmem:[%s1233 + $0x38] sm:$0xff]
        %v1242 = vld [vmem:[%s1233 + $0x40] sm:$0xff]
        %v1243 = vld [vmem:[%s1233 + $0x48] sm:$0xff]
        %v1244 = vld [vmem:[%s1233 + $0x50] sm:$0xff]
        %v1245 = vld [vmem:[%s1233 + $0x58] sm:$0xff]
        %v1246 = vld [vmem:[%s1233 + $0x60] sm:$0xff]
        %v1247 = vld [vmem:[%s1233 + $0x68] sm:$0xff]
        %v1248 = vld [vmem:[%s1233 + $0x70] sm:$0xff]
        %v1249 = vld [vmem:[%s1233 + $0x78] sm:$0xff]
        %v1250 = vld [vmem:[%s1233 + $0x80] sm:$0xff]
        %v1251 = vld [vmem:[%s1233 + $0x88] sm:$0xff]
        %v1252 = vld [vmem:[%s1233 + $0x90] sm:$0xff]
        %v1253 = vld [vmem:[%s1233 + $0x98] sm:$0xff]
        %v1254 = vld [vmem:[%s1233 + $0xa0] sm:$0xff]
        %v1255 = vld [vmem:[%s1233 + $0xa8] sm:$0xff]
        %v1256 = vld [vmem:[%s1233 + $0xb0] sm:$0xff]
        %v1257 = vld [vmem:[%s1233 + $0xb8] sm:$0xff]
        %v1258 = vld [vmem:[%s1233 + $0xc0] sm:$0xff]
        %v1259 = vld [vmem:[%s1233 + $0xc8] sm:$0xff]
        %v1260 = vld [vmem:[%s1233 + $0xd0] sm:$0xff]
        %v1261 = vld [vmem:[%s1233 + $0xd8] sm:$0xff]
        %v1262 = vld [vmem:[%s1233 + $0xe0] sm:$0xff]
        %v1263 = vld [vmem:[%s1233 + $0xe8] sm:$0xff]
        %v1264 = vld [vmem:[%s1233 + $0xf0] sm:$0xff]
        %v1265 = vld [vmem:[%s1233 + $0xf8] sm:$0xff]
        %1266 = vst [vmem:[#allocation1] ss:$2 sm:$0xff] %v377
        %v1267 = vld.sshfl [vmem:[#allocation1] sm:$0xff pattern:$0x75316420]
        %v1268 = vld.sshfl [vmem:[#allocation1 + $0x8] sm:$0xff pattern:$0x75316420]
        %1271 = vmatpush.msra.mxu0 %v1249
        %1272 = vmatpush.msra.mxu0 %v1248
        %1273 = vmatpush.msra.mxu0 %v1247
        %1274 = vmatpush.msra.mxu0 %v1246
        %1275 = vmatpush.msra.mxu0 %v1245
        %1276 = vmatpush.msra.mxu0 %v1244
        %1277 = vmatpush.msra.mxu0 %v1243
        %1278 = vmatpush.msra.mxu0 %v1242
        %1279 = vmatpush.msra.mxu0 %v1241
        %1280 = vmatpush.msra.mxu0 %v1240
        %1281 = vmatpush.msra.mxu0 %v1239
        %1282 = vmatpush.msra.mxu0 %v1238
        %1283 = vmatpush.msra.mxu0 %v1237
        %1284 = vmatpush.msra.mxu0 %v1236
        %1285 = vmatpush.msra.mxu0 %v1235
        %1286 = vmatpush.msra.mxu0 %v1234
        %1287 = vmatmul.f32.gmra.mxu0 %v1267
        %v1288 = vpop.f32.mrf.mxu0
        %v1289 = vadd.f32 0.0, %v1288
        %1290 = vdwg.mxu0
        %1291 = vmatpush.msra.mxu0 %v1265
        %1292 = vmatpush.msra.mxu0 %v1264
        %1293 = vmatpush.msra.mxu0 %v1263
        %1294 = vmatpush.msra.mxu0 %v1262
        %1295 = vmatpush.msra.mxu0 %v1261
        %1296 = vmatpush.msra.mxu0 %v1260
        %1297 = vmatpush.msra.mxu0 %v1259
        %1298 = vmatpush.msra.mxu0 %v1258
        %1299 = vmatpush.msra.mxu0 %v1257
        %1300 = vmatpush.msra.mxu0 %v1256
        %1301 = vmatpush.msra.mxu0 %v1255
        %1302 = vmatpush.msra.mxu0 %v1254
        %1303 = vmatpush.msra.mxu0 %v1253
        %1304 = vmatpush.msra.mxu0 %v1252
        %1305 = vmatpush.msra.mxu0 %v1251
        %1306 = vmatpush.msra.mxu0 %v1250
        %1307 = vmatmul.f32.gmra.mxu0 %v1268
        %v1308 = vpop.f32.mrf.mxu0
        %v1309 = vadd.f32 %v1289, %v1308
        %1310 = vdwg.mxu0
        %s1311 = scalar_lea.vmem [#allocation4], 64
        %v1312 = vld [vmem:[%s1311] sm:$0xff]
        %v1314 = vsel %vm537, %v1312, 0
        %v1317 = vsel %vm541, %v1309, 0
        %1319 = vmatpush.msra.mxu0 0.0
        %1320 = vmatpush.msra.mxu0 0.0
        %1321 = vmatpush.msra.mxu0 0.0
        %1322 = vmatpush.msra.mxu0 0.0
        %1323 = vmatpush.msra.mxu0 0.0
        %1324 = vmatpush.msra.mxu0 0.0
        %1325 = vmatpush.msra.mxu0 0.0
        %1326 = vmatpush.msra.mxu0 0.0
        %1327 = vmatpush.msra.mxu0 0.0
        %1328 = vmatpush.msra.mxu0 0.0
        %1329 = vmatpush.msra.mxu0 0.0
        %1330 = vmatpush.msra.mxu0 0.0
        %1331 = vmatpush.msra.mxu0 0.0
        %1332 = vmatpush.msra.mxu0 0.0
        %1333 = vmatpush.msra.mxu0 0.0
        %1334 = vmatpush.msra.mxu0 %v1317
        %1335 = vmatmul.f32.gmra.mxu0 %v1314
        %v1336 = vpop.f32.mrf.mxu0
        %v1337 = vadd.f32 0.0, %v1336
        %1338 = vdwg.mxu0
        %v1339 = vadd.f32 %v1232, %v1337
        %v1340 = vld [vmem:[#allocation6] sm:$0xff]
        %1342 = vset.pattern.permute.xlu0 0
        %1343 = vperm.xlu0 %1342, %v1340
        %v1344 = vpop.permute.xlu0 %1343
        %v1346 = vadd.f32 %v1339, %v1344
        %v1347 = vmax.f32 %v1346, 0.0
        %v1348 = vld [vmem:[#allocation7] sm:$0xff]
        %v1349 = vld [vmem:[#allocation7 + $0x8] sm:$0xff]
        %v1350 = vld [vmem:[#allocation7 + $0x10] sm:$0xff]
        %v1351 = vld [vmem:[#allocation7 + $0x18] sm:$0xff]
        %v1352 = vld [vmem:[#allocation7 + $0x20] sm:$0xff]
        %v1353 = vld [vmem:[#allocation7 + $0x28] sm:$0xff]
        %v1354 = vld [vmem:[#allocation7 + $0x30] sm:$0xff]
        %v1355 = vld [vmem:[#allocation7 + $0x38] sm:$0xff]
        %vm1356 = vcmask 523264
        %v1358 = vsel %vm1356, %v1347, 0
        %1360 = vmatpush.msra.mxu0 0.0
        %1361 = vmatpush.msra.mxu0 0.0
        %1362 = vmatpush.msra.mxu0 0.0
        %1363 = vmatpush.msra.mxu0 0.0
        %1364 = vmatpush.msra.mxu0 0.0
        %1365 = vmatpush.msra.mxu0 0.0
        %1366 = vmatpush.msra.mxu0 0.0
        %1367 = vmatpush.msra.mxu0 0.0
        %1368 = vmatpush.msra.mxu0 %v1355
        %1369 = vmatpush.msra.mxu0 %v1354
        %1370 = vmatpush.msra.mxu0 %v1353
        %1371 = vmatpush.msra.mxu0 %v1352
        %1372 = vmatpush.msra.mxu0 %v1351
        %1373 = vmatpush.msra.mxu0 %v1350
        %1374 = vmatpush.msra.mxu0 %v1349
        %1375 = vmatpush.msra.mxu0 %v1348
        %1376 = vmatmul.f32.gmra.mxu0 %v1358
        %v1377 = vpop.f32.mrf.mxu0
        %v1378 = vadd.f32 0.0, %v1377
        %1379 = vdwg.mxu0
        %v1380 = vld [vmem:[#allocation9] sm:$0xff]
        %v1381 = vld [vmem:[#allocation9 + $0x8] sm:$0xff]
        %s1382 = scalar_lea.vmem [#allocation7], 64
        %v1383 = vld [vmem:[%s1382] sm:$0xff]
        %v1384 = vld [vmem:[%s1382 + $0x8] sm:$0xff]
        %v1385 = vld [vmem:[%s1382 + $0x10] sm:$0xff]
        %v1386 = vld [vmem:[%s1382 + $0x18] sm:$0xff]
        %v1387 = vld [vmem:[%s1382 + $0x20] sm:$0xff]
        %v1388 = vld [vmem:[%s1382 + $0x28] sm:$0xff]
        %v1389 = vld [vmem:[%s1382 + $0x30] sm:$0xff]
        %v1390 = vld [vmem:[%s1382 + $0x38] sm:$0xff]
        %1391 = vmatpush.msra.mxu0 0.0
        %1392 = vmatpush.msra.mxu0 0.0
        %1393 = vmatpush.msra.mxu0 0.0
        %1394 = vmatpush.msra.mxu0 0.0
        %1395 = vmatpush.msra.mxu0 0.0
        %1396 = vmatpush.msra.mxu0 0.0
        %1397 = vmatpush.msra.mxu0 0.0
        %1398 = vmatpush.msra.mxu0 0.0
        %1399 = vmatpush.msra.mxu0 %v1390
        %1400 = vmatpush.msra.mxu0 %v1389
        %1401 = vmatpush.msra.mxu0 %v1388
        %1402 = vmatpush.msra.mxu0 %v1387
        %1403 = vmatpush.msra.mxu0 %v1386
        %1404 = vmatpush.msra.mxu0 %v1385
        %1405 = vmatpush.msra.mxu0 %v1384
        %1406 = vmatpush.msra.mxu0 %v1383
        %1407 = vmatmul.f32.gmra.mxu0 %v1358
        %v1408 = vpop.f32.mrf.mxu0
        %v1409 = vadd.f32 0.0, %v1408
        %1410 = vdwg.mxu0
        %s1411 = scalar_lea.vmem [#allocation9], 16
        %v1412 = vld [vmem:[%s1411] sm:$0xff]
        %v1413 = vld [vmem:[%s1411 + $0x8] sm:$0xff]
        %vm1414 = vcmask 64512
        %v1416 = vsel %vm1414, %v1412, 0
        %v1419 = vsel %vm1414, %v1413, 0
        %1421 = vmatpush.msra.mxu0 0.0
        %1422 = vmatpush.msra.mxu0 0.0
        %1423 = vmatpush.msra.mxu0 0.0
        %1424 = vmatpush.msra.mxu0 0.0
        %1425 = vmatpush.msra.mxu0 0.0
        %1426 = vmatpush.msra.mxu0 0.0
        %1427 = vmatpush.msra.mxu0 0.0
        %1428 = vmatpush.msra.mxu0 0.0
        %1429 = vmatpush.msra.mxu0 0.0
        %1430 = vmatpush.msra.mxu0 0.0
        %1431 = vmatpush.msra.mxu0 0.0
        %1432 = vmatpush.msra.mxu0 0.0
        %1433 = vmatpush.msra.mxu0 0.0
        %1434 = vmatpush.msra.mxu0 0.0
        %1435 = vmatpush.msra.mxu0 0.0
        %1436 = vmatpush.msra.mxu0 %v1409
        %1437 = vmatmul.f32.gmra.mxu0 %v1416
        %v1438 = vpop.f32.mrf.mxu0
        %v1439 = vadd.f32 0.0, %v1438
        %1440 = vmatmul.f32.gmra.mxu0 %v1419
        %v1441 = vpop.f32.mrf.mxu0
        %v1442 = vadd.f32 0.0, %v1441
        %1443 = vdwg.mxu0
        %v1445 = vsel %vm1414, %v1380, 0
        %v1448 = vsel %vm1414, %v1381, 0
        %1450 = vmatpush.msra.mxu0 0.0
        %1451 = vmatpush.msra.mxu0 0.0
        %1452 = vmatpush.msra.mxu0 0.0
        %1453 = vmatpush.msra.mxu0 0.0
        %1454 = vmatpush.msra.mxu0 0.0
        %1455 = vmatpush.msra.mxu0 0.0
        %1456 = vmatpush.msra.mxu0 0.0
        %1457 = vmatpush.msra.mxu0 0.0
        %1458 = vmatpush.msra.mxu0 0.0
        %1459 = vmatpush.msra.mxu0 0.0
        %1460 = vmatpush.msra.mxu0 0.0
        %1461 = vmatpush.msra.mxu0 0.0
        %1462 = vmatpush.msra.mxu0 0.0
        %1463 = vmatpush.msra.mxu0 0.0
        %1464 = vmatpush.msra.mxu0 0.0
        %1465 = vmatpush.msra.mxu0 %v1378
        %1466 = vmatmul.f32.gmra.mxu0 %v1445
        %v1467 = vpop.f32.mrf.mxu0
        %v1468 = vadd.f32 %v1439, %v1467
        %1469 = vmatmul.f32.gmra.mxu0 %v1448
        %v1470 = vpop.f32.mrf.mxu0
        %v1471 = vadd.f32 %v1442, %v1470
        %1472 = vdwg.mxu0
        %s1473 = scalar_lea.vmem [#allocation7], 128
        %v1474 = vld [vmem:[%s1473] sm:$0xff]
        %v1475 = vld [vmem:[%s1473 + $0x8] sm:$0xff]
        %v1476 = vld [vmem:[%s1473 + $0x10] sm:$0xff]
        %v1477 = vld [vmem:[%s1473 + $0x18] sm:$0xff]
        %v1478 = vld [vmem:[%s1473 + $0x20] sm:$0xff]
        %v1479 = vld [vmem:[%s1473 + $0x28] sm:$0xff]
        %v1480 = vld [vmem:[%s1473 + $0x30] sm:$0xff]
        %v1481 = vld [vmem:[%s1473 + $0x38] sm:$0xff]
        %1482 = vmatpush.msra.mxu0 0.0
        %1483 = vmatpush.msra.mxu0 0.0
        %1484 = vmatpush.msra.mxu0 0.0
        %1485 = vmatpush.msra.mxu0 0.0
        %1486 = vmatpush.msra.mxu0 0.0
        %1487 = vmatpush.msra.mxu0 0.0
        %1488 = vmatpush.msra.mxu0 0.0
        %1489 = vmatpush.msra.mxu0 0.0
        %1490 = vmatpush.msra.mxu0 %v1481
        %1491 = vmatpush.msra.mxu0 %v1480
        %1492 = vmatpush.msra.mxu0 %v1479
        %1493 = vmatpush.msra.mxu0 %v1478
        %1494 = vmatpush.msra.mxu0 %v1477
        %1495 = vmatpush.msra.mxu0 %v1476
        %1496 = vmatpush.msra.mxu0 %v1475
        %1497 = vmatpush.msra.mxu0 %v1474
        %1498 = vmatmul.f32.gmra.mxu0 %v1358
        %v1499 = vpop.f32.mrf.mxu0
        %v1500 = vadd.f32 0.0, %v1499
        %1501 = vdwg.mxu0
        %s1502 = scalar_lea.vmem [#allocation9], 32
        %v1503 = vld [vmem:[%s1502] sm:$0xff]
        %v1504 = vld [vmem:[%s1502 + $0x8] sm:$0xff]
        %v1506 = vsel %vm1414, %v1503, 0
        %v1509 = vsel %vm1414, %v1504, 0
        %1511 = vmatpush.msra.mxu0 0.0
        %1512 = vmatpush.msra.mxu0 0.0
        %1513 = vmatpush.msra.mxu0 0.0
        %1514 = vmatpush.msra.mxu0 0.0
        %1515 = vmatpush.msra.mxu0 0.0
        %1516 = vmatpush.msra.mxu0 0.0
        %1517 = vmatpush.msra.mxu0 0.0
        %1518 = vmatpush.msra.mxu0 0.0
        %1519 = vmatpush.msra.mxu0 0.0
        %1520 = vmatpush.msra.mxu0 0.0
        %1521 = vmatpush.msra.mxu0 0.0
        %1522 = vmatpush.msra.mxu0 0.0
        %1523 = vmatpush.msra.mxu0 0.0
        %1524 = vmatpush.msra.mxu0 0.0
        %1525 = vmatpush.msra.mxu0 0.0
        %1526 = vmatpush.msra.mxu0 %v1500
        %1527 = vmatmul.f32.gmra.mxu0 %v1506
        %v1528 = vpop.f32.mrf.mxu0
        %v1529 = vadd.f32 0.0, %v1528
        %1530 = vmatmul.f32.gmra.mxu0 %v1509
        %v1531 = vpop.f32.mrf.mxu0
        %v1532 = vadd.f32 0.0, %v1531
        %1533 = vdwg.mxu0
        %v1534 = vadd.f32 %v1468, %v1529
        %v1535 = vadd.f32 %v1471, %v1532
        %s1536 = scalar_lea.vmem [#allocation7], 192
        %v1537 = vld [vmem:[%s1536] sm:$0xff]
        %v1538 = vld [vmem:[%s1536 + $0x8] sm:$0xff]
        %v1539 = vld [vmem:[%s1536 + $0x10] sm:$0xff]
        %v1540 = vld [vmem:[%s1536 + $0x18] sm:$0xff]
        %v1541 = vld [vmem:[%s1536 + $0x20] sm:$0xff]
        %v1542 = vld [vmem:[%s1536 + $0x28] sm:$0xff]
        %v1543 = vld [vmem:[%s1536 + $0x30] sm:$0xff]
        %v1544 = vld [vmem:[%s1536 + $0x38] sm:$0xff]
        %1545 = vmatpush.msra.mxu0 0.0
        %1546 = vmatpush.msra.mxu0 0.0
        %1547 = vmatpush.msra.mxu0 0.0
        %1548 = vmatpush.msra.mxu0 0.0
        %1549 = vmatpush.msra.mxu0 0.0
        %1550 = vmatpush.msra.mxu0 0.0
        %1551 = vmatpush.msra.mxu0 0.0
        %1552 = vmatpush.msra.mxu0 0.0
        %1553 = vmatpush.msra.mxu0 %v1544
        %1554 = vmatpush.msra.mxu0 %v1543
        %1555 = vmatpush.msra.mxu0 %v1542
        %1556 = vmatpush.msra.mxu0 %v1541
        %1557 = vmatpush.msra.mxu0 %v1540
        %1558 = vmatpush.msra.mxu0 %v1539
        %1559 = vmatpush.msra.mxu0 %v1538
        %1560 = vmatpush.msra.mxu0 %v1537
        %1561 = vmatmul.f32.gmra.mxu0 %v1358
        %v1562 = vpop.f32.mrf.mxu0
        %v1563 = vadd.f32 0.0, %v1562
        %1564 = vdwg.mxu0
        %s1565 = scalar_lea.vmem [#allocation9], 48
        %v1566 = vld [vmem:[%s1565] sm:$0xff]
        %v1567 = vld [vmem:[%s1565 + $0x8] sm:$0xff]
        %v1569 = vsel %vm1414, %v1566, 0
        %v1572 = vsel %vm1414, %v1567, 0
        %1574 = vmatpush.msra.mxu0 0.0
        %1575 = vmatpush.msra.mxu0 0.0
        %1576 = vmatpush.msra.mxu0 0.0
        %1577 = vmatpush.msra.mxu0 0.0
        %1578 = vmatpush.msra.mxu0 0.0
        %1579 = vmatpush.msra.mxu0 0.0
        %1580 = vmatpush.msra.mxu0 0.0
        %1581 = vmatpush.msra.mxu0 0.0
        %1582 = vmatpush.msra.mxu0 0.0
        %1583 = vmatpush.msra.mxu0 0.0
        %1584 = vmatpush.msra.mxu0 0.0
        %1585 = vmatpush.msra.mxu0 0.0
        %1586 = vmatpush.msra.mxu0 0.0
        %1587 = vmatpush.msra.mxu0 0.0
        %1588 = vmatpush.msra.mxu0 0.0
        %1589 = vmatpush.msra.mxu0 %v1563
        %1590 = vmatmul.f32.gmra.mxu0 %v1569
        %v1591 = vpop.f32.mrf.mxu0
        %v1592 = vadd.f32 0.0, %v1591
        %1593 = vmatmul.f32.gmra.mxu0 %v1572
        %v1594 = vpop.f32.mrf.mxu0
        %v1595 = vadd.f32 0.0, %v1594
        %1596 = vdwg.mxu0
        %v1597 = vadd.f32 %v1534, %v1592
        %v1598 = vadd.f32 %v1535, %v1595
        %s1599 = scalar_lea.vmem [#allocation7], 256
        %v1600 = vld [vmem:[%s1599] sm:$0xff]
        %v1601 = vld [vmem:[%s1599 + $0x8] sm:$0xff]
        %v1602 = vld [vmem:[%s1599 + $0x10] sm:$0xff]
        %v1603 = vld [vmem:[%s1599 + $0x18] sm:$0xff]
        %v1604 = vld [vmem:[%s1599 + $0x20] sm:$0xff]
        %v1605 = vld [vmem:[%s1599 + $0x28] sm:$0xff]
        %v1606 = vld [vmem:[%s1599 + $0x30] sm:$0xff]
        %v1607 = vld [vmem:[%s1599 + $0x38] sm:$0xff]
        %1608 = vmatpush.msra.mxu0 0.0
        %1609 = vmatpush.msra.mxu0 0.0
        %1610 = vmatpush.msra.mxu0 0.0
        %1611 = vmatpush.msra.mxu0 0.0
        %1612 = vmatpush.msra.mxu0 0.0
        %1613 = vmatpush.msra.mxu0 0.0
        %1614 = vmatpush.msra.mxu0 0.0
        %1615 = vmatpush.msra.mxu0 0.0
        %1616 = vmatpush.msra.mxu0 %v1607
        %1617 = vmatpush.msra.mxu0 %v1606
        %1618 = vmatpush.msra.mxu0 %v1605
        %1619 = vmatpush.msra.mxu0 %v1604
        %1620 = vmatpush.msra.mxu0 %v1603
        %1621 = vmatpush.msra.mxu0 %v1602
        %1622 = vmatpush.msra.mxu0 %v1601
        %1623 = vmatpush.msra.mxu0 %v1600
        %1624 = vmatmul.f32.gmra.mxu0 %v1358
        %v1625 = vpop.f32.mrf.mxu0
        %v1626 = vadd.f32 0.0, %v1625
        %1627 = vdwg.mxu0
        %s1628 = scalar_lea.vmem [#allocation9], 64
        %v1629 = vld [vmem:[%s1628] sm:$0xff]
        %v1630 = vld [vmem:[%s1628 + $0x8] sm:$0xff]
        %v1632 = vsel %vm1414, %v1629, 0
        %v1635 = vsel %vm1414, %v1630, 0
        %1637 = vmatpush.msra.mxu0 0.0
        %1638 = vmatpush.msra.mxu0 0.0
        %1639 = vmatpush.msra.mxu0 0.0
        %1640 = vmatpush.msra.mxu0 0.0
        %1641 = vmatpush.msra.mxu0 0.0
        %1642 = vmatpush.msra.mxu0 0.0
        %1643 = vmatpush.msra.mxu0 0.0
        %1644 = vmatpush.msra.mxu0 0.0
        %1645 = vmatpush.msra.mxu0 0.0
        %1646 = vmatpush.msra.mxu0 0.0
        %1647 = vmatpush.msra.mxu0 0.0
        %1648 = vmatpush.msra.mxu0 0.0
        %1649 = vmatpush.msra.mxu0 0.0
        %1650 = vmatpush.msra.mxu0 0.0
        %1651 = vmatpush.msra.mxu0 0.0
        %1652 = vmatpush.msra.mxu0 %v1626
        %1653 = vmatmul.f32.gmra.mxu0 %v1632
        %v1654 = vpop.f32.mrf.mxu0
        %v1655 = vadd.f32 0.0, %v1654
        %1656 = vmatmul.f32.gmra.mxu0 %v1635
        %v1657 = vpop.f32.mrf.mxu0
        %v1658 = vadd.f32 0.0, %v1657
        %1659 = vdwg.mxu0
        %v1660 = vadd.f32 %v1597, %v1655
        %v1661 = vadd.f32 %v1598, %v1658
        %s1662 = scalar_lea.vmem [#allocation7], 320
        %v1663 = vld [vmem:[%s1662] sm:$0xff]
        %v1664 = vld [vmem:[%s1662 + $0x8] sm:$0xff]
        %v1665 = vld [vmem:[%s1662 + $0x10] sm:$0xff]
        %v1666 = vld [vmem:[%s1662 + $0x18] sm:$0xff]
        %v1667 = vld [vmem:[%s1662 + $0x20] sm:$0xff]
        %v1668 = vld [vmem:[%s1662 + $0x28] sm:$0xff]
        %v1669 = vld [vmem:[%s1662 + $0x30] sm:$0xff]
        %v1670 = vld [vmem:[%s1662 + $0x38] sm:$0xff]
        %1671 = vmatpush.msra.mxu0 0.0
        %1672 = vmatpush.msra.mxu0 0.0
        %1673 = vmatpush.msra.mxu0 0.0
        %1674 = vmatpush.msra.mxu0 0.0
        %1675 = vmatpush.msra.mxu0 0.0
        %1676 = vmatpush.msra.mxu0 0.0
        %1677 = vmatpush.msra.mxu0 0.0
        %1678 = vmatpush.msra.mxu0 0.0
        %1679 = vmatpush.msra.mxu0 %v1670
        %1680 = vmatpush.msra.mxu0 %v1669
        %1681 = vmatpush.msra.mxu0 %v1668
        %1682 = vmatpush.msra.mxu0 %v1667
        %1683 = vmatpush.msra.mxu0 %v1666
        %1684 = vmatpush.msra.mxu0 %v1665
        %1685 = vmatpush.msra.mxu0 %v1664
        %1686 = vmatpush.msra.mxu0 %v1663
        %1687 = vmatmul.f32.gmra.mxu0 %v1358
        %v1688 = vpop.f32.mrf.mxu0
        %v1689 = vadd.f32 0.0, %v1688
        %1690 = vdwg.mxu0
        %s1691 = scalar_lea.vmem [#allocation9], 80
        %v1692 = vld [vmem:[%s1691] sm:$0xff]
        %v1693 = vld [vmem:[%s1691 + $0x8] sm:$0xff]
        %v1695 = vsel %vm1414, %v1692, 0
        %v1698 = vsel %vm1414, %v1693, 0
        %1700 = vmatpush.msra.mxu0 0.0
        %1701 = vmatpush.msra.mxu0 0.0
        %1702 = vmatpush.msra.mxu0 0.0
        %1703 = vmatpush.msra.mxu0 0.0
        %1704 = vmatpush.msra.mxu0 0.0
        %1705 = vmatpush.msra.mxu0 0.0
        %1706 = vmatpush.msra.mxu0 0.0
        %1707 = vmatpush.msra.mxu0 0.0
        %1708 = vmatpush.msra.mxu0 0.0
        %1709 = vmatpush.msra.mxu0 0.0
        %1710 = vmatpush.msra.mxu0 0.0
        %1711 = vmatpush.msra.mxu0 0.0
        %1712 = vmatpush.msra.mxu0 0.0
        %1713 = vmatpush.msra.mxu0 0.0
        %1714 = vmatpush.msra.mxu0 0.0
        %1715 = vmatpush.msra.mxu0 %v1689
        %1716 = vmatmul.f32.gmra.mxu0 %v1695
        %v1717 = vpop.f32.mrf.mxu0
        %v1718 = vadd.f32 0.0, %v1717
        %1719 = vmatmul.f32.gmra.mxu0 %v1698
        %v1720 = vpop.f32.mrf.mxu0
        %v1721 = vadd.f32 0.0, %v1720
        %1722 = vdwg.mxu0
        %v1723 = vadd.f32 %v1660, %v1718
        %v1724 = vadd.f32 %v1661, %v1721
        %s1725 = scalar_lea.vmem [#allocation7], 384
        %v1726 = vld [vmem:[%s1725] sm:$0xff]
        %v1727 = vld [vmem:[%s1725 + $0x8] sm:$0xff]
        %v1728 = vld [vmem:[%s1725 + $0x10] sm:$0xff]
        %v1729 = vld [vmem:[%s1725 + $0x18] sm:$0xff]
        %v1730 = vld [vmem:[%s1725 + $0x20] sm:$0xff]
        %v1731 = vld [vmem:[%s1725 + $0x28] sm:$0xff]
        %v1732 = vld [vmem:[%s1725 + $0x30] sm:$0xff]
        %v1733 = vld [vmem:[%s1725 + $0x38] sm:$0xff]
        %1734 = vmatpush.msra.mxu0 0.0
        %1735 = vmatpush.msra.mxu0 0.0
        %1736 = vmatpush.msra.mxu0 0.0
        %1737 = vmatpush.msra.mxu0 0.0
        %1738 = vmatpush.msra.mxu0 0.0
        %1739 = vmatpush.msra.mxu0 0.0
        %1740 = vmatpush.msra.mxu0 0.0
        %1741 = vmatpush.msra.mxu0 0.0
        %1742 = vmatpush.msra.mxu0 %v1733
        %1743 = vmatpush.msra.mxu0 %v1732
        %1744 = vmatpush.msra.mxu0 %v1731
        %1745 = vmatpush.msra.mxu0 %v1730
        %1746 = vmatpush.msra.mxu0 %v1729
        %1747 = vmatpush.msra.mxu0 %v1728
        %1748 = vmatpush.msra.mxu0 %v1727
        %1749 = vmatpush.msra.mxu0 %v1726
        %1750 = vmatmul.f32.gmra.mxu0 %v1358
        %v1751 = vpop.f32.mrf.mxu0
        %v1752 = vadd.f32 0.0, %v1751
        %1753 = vdwg.mxu0
        %s1754 = scalar_lea.vmem [#allocation9], 96
        %v1755 = vld [vmem:[%s1754] sm:$0xff]
        %v1756 = vld [vmem:[%s1754 + $0x8] sm:$0xff]
        %v1758 = vsel %vm1414, %v1755, 0
        %v1761 = vsel %vm1414, %v1756, 0
        %1763 = vmatpush.msra.mxu0 0.0
        %1764 = vmatpush.msra.mxu0 0.0
        %1765 = vmatpush.msra.mxu0 0.0
        %1766 = vmatpush.msra.mxu0 0.0
        %1767 = vmatpush.msra.mxu0 0.0
        %1768 = vmatpush.msra.mxu0 0.0
        %1769 = vmatpush.msra.mxu0 0.0
        %1770 = vmatpush.msra.mxu0 0.0
        %1771 = vmatpush.msra.mxu0 0.0
        %1772 = vmatpush.msra.mxu0 0.0
        %1773 = vmatpush.msra.mxu0 0.0
        %1774 = vmatpush.msra.mxu0 0.0
        %1775 = vmatpush.msra.mxu0 0.0
        %1776 = vmatpush.msra.mxu0 0.0
        %1777 = vmatpush.msra.mxu0 0.0
        %1778 = vmatpush.msra.mxu0 %v1752
        %1779 = vmatmul.f32.gmra.mxu0 %v1758
        %v1780 = vpop.f32.mrf.mxu0
        %v1781 = vadd.f32 0.0, %v1780
        %1782 = vmatmul.f32.gmra.mxu0 %v1761
        %v1783 = vpop.f32.mrf.mxu0
        %v1784 = vadd.f32 0.0, %v1783
        %1785 = vdwg.mxu0
        %v1786 = vadd.f32 %v1723, %v1781
        %v1787 = vadd.f32 %v1724, %v1784
        %s1788 = scalar_lea.vmem [#allocation7], 448
        %v1789 = vld [vmem:[%s1788] sm:$0xff]
        %v1790 = vld [vmem:[%s1788 + $0x8] sm:$0xff]
        %v1791 = vld [vmem:[%s1788 + $0x10] sm:$0xff]
        %v1792 = vld [vmem:[%s1788 + $0x18] sm:$0xff]
        %v1793 = vld [vmem:[%s1788 + $0x20] sm:$0xff]
        %v1794 = vld [vmem:[%s1788 + $0x28] sm:$0xff]
        %v1795 = vld [vmem:[%s1788 + $0x30] sm:$0xff]
        %v1796 = vld [vmem:[%s1788 + $0x38] sm:$0xff]
        %1797 = vmatpush.msra.mxu0 0.0
        %1798 = vmatpush.msra.mxu0 0.0
        %1799 = vmatpush.msra.mxu0 0.0
        %1800 = vmatpush.msra.mxu0 0.0
        %1801 = vmatpush.msra.mxu0 0.0
        %1802 = vmatpush.msra.mxu0 0.0
        %1803 = vmatpush.msra.mxu0 0.0
        %1804 = vmatpush.msra.mxu0 0.0
        %1805 = vmatpush.msra.mxu0 %v1796
        %1806 = vmatpush.msra.mxu0 %v1795
        %1807 = vmatpush.msra.mxu0 %v1794
        %1808 = vmatpush.msra.mxu0 %v1793
        %1809 = vmatpush.msra.mxu0 %v1792
        %1810 = vmatpush.msra.mxu0 %v1791
        %1811 = vmatpush.msra.mxu0 %v1790
        %1812 = vmatpush.msra.mxu0 %v1789
        %1813 = vmatmul.f32.gmra.mxu0 %v1358
        %v1814 = vpop.f32.mrf.mxu0
        %v1815 = vadd.f32 0.0, %v1814
        %1816 = vdwg.mxu0
        %s1817 = scalar_lea.vmem [#allocation9], 112
        %v1818 = vld [vmem:[%s1817] sm:$0xff]
        %v1819 = vld [vmem:[%s1817 + $0x8] sm:$0xff]
        %v1821 = vsel %vm1414, %v1818, 0
        %v1824 = vsel %vm1414, %v1819, 0
        %1826 = vmatpush.msra.mxu0 0.0
        %1827 = vmatpush.msra.mxu0 0.0
        %1828 = vmatpush.msra.mxu0 0.0
        %1829 = vmatpush.msra.mxu0 0.0
        %1830 = vmatpush.msra.mxu0 0.0
        %1831 = vmatpush.msra.mxu0 0.0
        %1832 = vmatpush.msra.mxu0 0.0
        %1833 = vmatpush.msra.mxu0 0.0
        %1834 = vmatpush.msra.mxu0 0.0
        %1835 = vmatpush.msra.mxu0 0.0
        %1836 = vmatpush.msra.mxu0 0.0
        %1837 = vmatpush.msra.mxu0 0.0
        %1838 = vmatpush.msra.mxu0 0.0
        %1839 = vmatpush.msra.mxu0 0.0
        %1840 = vmatpush.msra.mxu0 0.0
        %1841 = vmatpush.msra.mxu0 %v1815
        %1842 = vmatmul.f32.gmra.mxu0 %v1821
        %v1843 = vpop.f32.mrf.mxu0
        %v1844 = vadd.f32 0.0, %v1843
        %1845 = vmatmul.f32.gmra.mxu0 %v1824
        %v1846 = vpop.f32.mrf.mxu0
        %v1847 = vadd.f32 0.0, %v1846
        %1848 = vdwg.mxu0
        %v1849 = vadd.f32 %v1786, %v1844
        %v1850 = vadd.f32 %v1787, %v1847
        %s1851 = scalar_lea.vmem [#allocation7], 512
        %v1852 = vld [vmem:[%s1851] sm:$0xff]
        %v1853 = vld [vmem:[%s1851 + $0x8] sm:$0xff]
        %v1854 = vld [vmem:[%s1851 + $0x10] sm:$0xff]
        %v1855 = vld [vmem:[%s1851 + $0x18] sm:$0xff]
        %v1856 = vld [vmem:[%s1851 + $0x20] sm:$0xff]
        %v1857 = vld [vmem:[%s1851 + $0x28] sm:$0xff]
        %v1858 = vld [vmem:[%s1851 + $0x30] sm:$0xff]
        %v1859 = vld [vmem:[%s1851 + $0x38] sm:$0xff]
        %1860 = vmatpush.msra.mxu0 0.0
        %1861 = vmatpush.msra.mxu0 0.0
        %1862 = vmatpush.msra.mxu0 0.0
        %1863 = vmatpush.msra.mxu0 0.0
        %1864 = vmatpush.msra.mxu0 0.0
        %1865 = vmatpush.msra.mxu0 0.0
        %1866 = vmatpush.msra.mxu0 0.0
        %1867 = vmatpush.msra.mxu0 0.0
        %1868 = vmatpush.msra.mxu0 %v1859
        %1869 = vmatpush.msra.mxu0 %v1858
        %1870 = vmatpush.msra.mxu0 %v1857
        %1871 = vmatpush.msra.mxu0 %v1856
        %1872 = vmatpush.msra.mxu0 %v1855
        %1873 = vmatpush.msra.mxu0 %v1854
        %1874 = vmatpush.msra.mxu0 %v1853
        %1875 = vmatpush.msra.mxu0 %v1852
        %1876 = vmatmul.f32.gmra.mxu0 %v1358
        %v1877 = vpop.f32.mrf.mxu0
        %v1878 = vadd.f32 0.0, %v1877
        %1879 = vdwg.mxu0
        %s1880 = scalar_lea.vmem [#allocation9], 128
        %v1881 = vld [vmem:[%s1880] sm:$0xff]
        %v1882 = vld [vmem:[%s1880 + $0x8] sm:$0xff]
        %v1884 = vsel %vm1414, %v1881, 0
        %v1887 = vsel %vm1414, %v1882, 0
        %1889 = vmatpush.msra.mxu0 0.0
        %1890 = vmatpush.msra.mxu0 0.0
        %1891 = vmatpush.msra.mxu0 0.0
        %1892 = vmatpush.msra.mxu0 0.0
        %1893 = vmatpush.msra.mxu0 0.0
        %1894 = vmatpush.msra.mxu0 0.0
        %1895 = vmatpush.msra.mxu0 0.0
        %1896 = vmatpush.msra.mxu0 0.0
        %1897 = vmatpush.msra.mxu0 0.0
        %1898 = vmatpush.msra.mxu0 0.0
        %1899 = vmatpush.msra.mxu0 0.0
        %1900 = vmatpush.msra.mxu0 0.0
        %1901 = vmatpush.msra.mxu0 0.0
        %1902 = vmatpush.msra.mxu0 0.0
        %1903 = vmatpush.msra.mxu0 0.0
        %1904 = vmatpush.msra.mxu0 %v1878
        %1905 = vmatmul.f32.gmra.mxu0 %v1884
        %v1906 = vpop.f32.mrf.mxu0
        %v1907 = vadd.f32 0.0, %v1906
        %1908 = vmatmul.f32.gmra.mxu0 %v1887
        %v1909 = vpop.f32.mrf.mxu0
        %v1910 = vadd.f32 0.0, %v1909
        %1911 = vdwg.mxu0
        %v1912 = vadd.f32 %v1849, %v1907
        %v1913 = vadd.f32 %v1850, %v1910
        %v1914 = vld [vmem:[#allocation10] sm:$0xff]
        %v1915 = vld [vmem:[#allocation10 + $0x8] sm:$0xff]
        %1917 = vset.pattern.permute.xlu0 0
        %1918 = vperm.xlu0 %1917, %v1914
        %v1919 = vpop.permute.xlu0 %1918
        %1922 = vset.pattern.permute.xlu0 0
        %1923 = vperm.xlu0 %1922, %v1915
        %v1924 = vpop.permute.xlu0 %1923
        %v1926 = vadd.f32 %v1912, %v1919
        %v1927 = vadd.f32 %v1913, %v1924
        %v1928 = vmax.f32 %v1926, 0.0
        %v1929 = vmax.f32 %v1927, 0.0
        %vm1930 = vcmask 130048
        %1931 = vst.msk [vmem:[%s376] sm:$0xff] %vm1930, %v1928
        %1932 = vst.msk [vmem:[%s376 + $0x8] sm:$0xff] %vm1930, %v1929
        %p1933 = scmp.lt.s32.totalorder %s22, 1
        %s1934 = scalar_select %p1933, %s22, 1
        %s1935 = smul.addr %s1934, 2
        %s1936 = smul.addr %s1935, 8
        %s1937 = scalar_lea.vmem %s7, %s1936
        // Predicated region
        $region73: #{_forward_impl.2} parent=47 // pred_check
          %p1938 = pneg %p192
        $region74: #{_forward_impl.2} parent=47 // pred_check_branch
          %1940 = sbr.rel (%p1938) target = $region76
        $region75: #{_forward_impl.2} parent=47 // pred_region
          _
        $region76: #{_forward_impl.2} parent=47 // pred_fallthru
          _
      $region48: #{_forward_impl.2} parent=5 // pred_fallthru
        _
      %p1941 = scmp.le.s32.totalorder 2, %s17
      // Predicated region
      $region77: #{_forward_impl.2} parent=5 // pred_check
        %p1942 = pneg %p1941
      $region78: #{_forward_impl.2} parent=5 // pred_check_branch
        %1944 = sbr.rel (%p1942) target = $region80
      $region79: #{_forward_impl.2} parent=5 // pred_region
        %s1945 = ssub.s32 %s17, 2
        // Predicated region
        $region81: #{_forward_impl.2} parent=79 // pred_check
          %p1946 = pneg %p198
        $region82: #{_forward_impl.2} parent=79 // pred_check_branch
          %1948 = sbr.rel (%p1946) target = $region84
        $region83: #{_forward_impl.2} parent=79 // pred_region
          %p1949 = scmp.lt.s32.totalorder %s23, 1
          %s1950 = scalar_select %p1949, %s23, 1
          %s1951 = smul.addr %s1950, 2
          %s1952 = smul.addr %s1951, 8
          %s1953 = scalar_lea.vmem %s7, %s1952
        $region84: #{_forward_impl.2} parent=79 // pred_fallthru
          _
      $region80: #{_forward_impl.2} parent=5 // pred_fallthru
        _
    $region6: #{_forward_impl.2} parent=1 // loop_footer
      %s21 = sadd.s32 1, %s17
    $region7: #{_forward_impl.2} parent=1 // loop_footer_branch
      %16 = sbr.rel target = $region3
    $region8: #{_forward_impl.2} parent=1 // loop_exit
      _
    %1954 = vsyncpa [#allocation3], 1
    %s1955 = scalar_lea.sflag [#allocation3], 1
    %1956 = vsyncpa %s1955, 1
    %1957 = vsyncpa [#allocation5], 1
    %1958 = vsyncpa [#allocation8], 1
    %1959 = vsyncpa [#allocation11], 1

</llo_original>
